<compile_context>
chip_gen: v6e
topology: v6e:2x2x1
jax: 0.10.0
libtpu: 0.0.40
codegen_flags: <defaults>
</compile_context>

<pallas_src>
import functools

import jax
import jax.numpy as jnp
from jax.experimental import pallas as pl
from jax.experimental.pallas import tpu as pltpu

LEAKY_SLOPE = 0.15          # negative_slope used by the GATEncoder module
MASK_BIAS = 1e9             # additive mask magnitude for non-edges
VALID_THRESHOLD = -1e8      # running max above this => node has >=1 incoming edge


def _round_up(a, b):
    return (a + b - 1) // b * b


def _pick_tile(n):
    # (F, tile, tile) pair temp must stay small: tile=128, F<=128 -> <=8 MiB
    # f32 (4 MiB bf16) per live temp; one head live at a time via pl.loop, so
    # this fits v5e/v6e (128 MiB VMEM) and v7x (64 MiB).
    if n <= 128:
        return _round_up(n, 8)
    return 128


def _pair_dtype_for_device():
    # bf16 VALUs exist on v6e / v7x; v5e (and older) keep f32 pair math so the
    # compiler does not insert per-op converts.
    try:
        kind = jax.devices()[0].device_kind.lower()
    except Exception:
        return jnp.float32
    if ("v6" in kind) or ("v7" in kind) or ("7x" in kind):
        return jnp.bfloat16
    return jnp.float32


# ----------------------------------------------------------------------------
# Pallas kernel: one GATv2 layer (attention part), all heads, online softmax.
# ----------------------------------------------------------------------------
def _gatv2_attn_kernel(edge_tile_ref, xrT_ref, xlT_ref, xl_ref, attp_ref,
                       ar_ref, al_ref, adjb_ref, bias_ref, out_ref,
                       m_ref, l_ref, acc_ref, *, heads, mean_heads):
    i = pl.program_id(0)
    j = pl.program_id(1)
    nj = pl.num_programs(1)

    @pl.when(j == 0)
    def _init():
        m_ref[...] = jnp.full(m_ref.shape, -1e30, jnp.float32)
        l_ref[...] = jnp.zeros_like(l_ref)
        acc_ref[...] = jnp.zeros_like(acc_ref)

    # Tile-level sparsity skip: all-masked (i, j) tiles cost only their DMAs.
    @pl.when(edge_tile_ref[i, j] != 0)
    def _compute():
        adjb = adjb_ref[...].astype(jnp.float32)        # (TI, TJ): 0 edge / -1e9

        # pl.loop (not an unrolled Python for) bounds the live range of the
        # per-head (F, TI, TJ) temporaries to a single head.
        @pl.loop(0, heads)
        def _per_head(h):
            xrT_h = xrT_ref[h]                           # (F, TI)  pair dtype
            xlT_h = xlT_ref[h]                           # (F, TJ)  pair dtype
            attp_h = attp_ref[h]                         # (F, 1)   pair dtype

            # GATv2 score, relu part.  Lane dim is TJ (128-dense vregs); the
            # F reduction is a plain accumulation over the leading axis.
            pair = xrT_h[:, :, None] + xlT_h[:, None, :]         # (F, TI, TJ)
            act = jnp.maximum(pair, 0.0)
            srel = jnp.sum(act * attp_h[:, :, None], axis=0)     # (TI, TJ)
            # + rank-1 leaky correction (precomputed, already * slope) + mask.
            s = srel.astype(jnp.float32) + ar_ref[h] + al_ref[h] + adjb

            # Online masked softmax over source tiles (f32 state).
            m_prev = m_ref[h]                                    # (TI, 1)
            m_new = jnp.maximum(m_prev, jnp.max(s, axis=-1, keepdims=True))
            corr = jnp.exp(m_prev - m_new)
            p = jnp.exp(s - m_new)                               # (TI, TJ)
            l_ref[h] = corr * l_ref[h] + jnp.sum(p, axis=-1, keepdims=True)
            acc_ref[h] = corr * acc_ref[h] + jnp.dot(
                p.astype(jnp.bfloat16), xl_ref[h],
                preferred_element_type=jnp.float32)              # (TI, F)
            m_ref[h] = m_new

    @pl.when(j == nj - 1)
    def _finalize():
        if mean_heads:
            # concat=False: mean over heads, then conv bias + fused ReLU.
            total = jnp.zeros(acc_ref.shape[1:], jnp.float32)
            for h in range(heads):
                valid = m_ref[h] > VALID_THRESHOLD
                inv_l = pl.reciprocal(l_ref[h], approx=True)
                total = total + jnp.where(valid, acc_ref[h] * inv_l, 0.0)
            res = total * (1.0 / heads) + bias_ref[0]
            out_ref[...] = jnp.maximum(res, 0.0).astype(out_ref.dtype)
        else:
            # concat=True: head-major (H, TI, F) output, aligned per-head slabs.
            for h in range(heads):
                valid = m_ref[h] > VALID_THRESHOLD
                inv_l = pl.reciprocal(l_ref[h], approx=True)
                res = jnp.where(valid, acc_ref[h] * inv_l, 0.0) + bias_ref[h]
                out_ref[h] = jnp.maximum(res, 0.0).astype(out_ref.dtype)


def gatv2_layer(x_pad, adjb, edge_tile, params, *, heads, head_dim, mean_heads,
                tile, pair_dtype):
    """One GATv2Conv layer (+ conv bias + fused ReLU).  Returns (N_pad, OUT)."""
    n_pad = x_pad.shape[0]
    H, F = heads, head_dim
    nt = n_pad // tile

    # ---- hoisted projections: one wide MXU pass each, not per grid step -----
    xl = jnp.dot(x_pad, params["wl"]) + params["bl"]             # (N, H*F) source
    xr = jnp.dot(x_pad, params["wr"]) + params["br"]             # (N, H*F) target
    xl_hm = jnp.transpose(xl.reshape(n_pad, H, F), (1, 0, 2))    # (H, N, F)
    xr_hm = jnp.transpose(xr.reshape(n_pad, H, F), (1, 0, 2))    # (H, N, F)
    att_hm = params["att"].reshape(H, F)                         # (H, F)

    # leaky_relu split: att.leaky(xr_i+xl_j) = slope*(aR_i+aL_j) + att'.relu(.)
    a_r = (LEAKY_SLOPE * jnp.einsum("hnf,hf->hn", xr_hm, att_hm))[:, :, None]
    a_l = (LEAKY_SLOPE * jnp.einsum("hnf,hf->hn", xl_hm, att_hm))[:, None, :]
    attp = ((1.0 - LEAKY_SLOPE) * att_hm)[:, :, None]            # (H, F, 1)

    xrT_hm = jnp.transpose(xr_hm, (0, 2, 1))                     # (H, F, N)
    xlT_hm = jnp.transpose(xl_hm, (0, 2, 1))                     # (H, F, N)

    if mean_heads:
        bias_hm = params["bias"].reshape(1, 1, F)
        out_shape = jax.ShapeDtypeStruct((n_pad, F), jnp.float32)
        out_spec = pl.BlockSpec((tile, F), lambda i, j, et: (i, 0))
    else:
        bias_hm = jnp.transpose(params["bias"].reshape(1, H, F), (1, 0, 2))
        out_shape = jax.ShapeDtypeStruct((H, n_pad, F), jnp.float32)
        out_spec = pl.BlockSpec((H, tile, F), lambda i, j, et: (0, i, 0))

    kernel = functools.partial(_gatv2_attn_kernel, heads=heads,
                               mean_heads=mean_heads)
    out = pl.pallas_call(
        kernel,
        out_shape=out_shape,
        grid_spec=pltpu.PrefetchScalarGridSpec(
            num_scalar_prefetch=1,                               # edge_tile -> SMEM
            grid=(nt, nt),
            in_specs=[
                pl.BlockSpec((H, F, tile), lambda i, j, et: (0, 0, i)),   # xr^T
                pl.BlockSpec((H, F, tile), lambda i, j, et: (0, 0, j)),   # xl^T
                pl.BlockSpec((H, tile, F), lambda i, j, et: (0, j, 0)),   # xl (MXU)
                pl.BlockSpec((H, F, 1), lambda i, j, et: (0, 0, 0)),      # att'
                pl.BlockSpec((H, tile, 1), lambda i, j, et: (0, i, 0)),   # slope*att.xr
                pl.BlockSpec((H, 1, tile), lambda i, j, et: (0, 0, j)),   # slope*att.xl
                pl.BlockSpec((tile, tile), lambda i, j, et: (i, j)),      # adj bias
                pl.BlockSpec(bias_hm.shape, lambda i, j, et: (0, 0, 0)),  # conv bias
            ],
            out_specs=out_spec,
            scratch_shapes=[
                pltpu.VMEM((H, tile, 1), jnp.float32),   # running max
                pltpu.VMEM((H, tile, 1), jnp.float32),   # running denom
                pltpu.VMEM((H, tile, F), jnp.float32),   # running numerator
            ]),
        compiler_params=pltpu.CompilerParams(
            dimension_semantics=("parallel", "arbitrary")),
    )(edge_tile,
      xrT_hm.astype(pair_dtype), xlT_hm.astype(pair_dtype),
      xl_hm.astype(jnp.bfloat16), attp.astype(pair_dtype),
      a_r.astype(jnp.float32), a_l.astype(jnp.float32),
      adjb, bias_hm.astype(jnp.float32))

    if mean_heads:
        return out                                               # (N_pad, F)
    return jnp.transpose(out, (1, 0, 2)).reshape(n_pad, H * F)   # (N_pad, H*F)


# ----------------------------------------------------------------------------
# Parameter setup (deterministic, in-script) and full GATEncoder forward.
# ----------------------------------------------------------------------------
def init_gatv2_params(key, in_ch, out_ch, heads, concat):
    hf = heads * out_ch
    ks = jax.random.split(key, 6)
    s_lin = jnp.sqrt(2.0 / (in_ch + hf)).astype(jnp.float32)
    s_att = jnp.sqrt(2.0 / (out_ch + 1)).astype(jnp.float32)
    out_width = hf if concat else out_ch
    return {
        "wl": jax.random.normal(ks[0], (in_ch, hf), jnp.float32) * s_lin,
        "wr": jax.random.normal(ks[1], (in_ch, hf), jnp.float32) * s_lin,
        "bl": jax.random.normal(ks[2], (1, hf), jnp.float32) * 0.01,
        "br": jax.random.normal(ks[3], (1, hf), jnp.float32) * 0.01,
        "att": jax.random.normal(ks[4], (1, hf), jnp.float32) * s_att,
        "bias": jax.random.normal(ks[5], (1, out_width), jnp.float32) * 0.01,
    }


def gat_encoder_forward(x, edge_index, params1, params2, *, heads, hidden, embed):
    """GATEncoder.forward: x (N, input_size), edge_index (2, E) int32."""
    n, _ = x.shape
    tile = _pick_tile(n)
    n_pad = _round_up(n, tile)
    nt = n_pad // tile

    x_pad = jnp.zeros((n_pad, x.shape[1]), jnp.float32).at[:n].set(x)
    src, dst = edge_index[0], edge_index[1]
    # Dense adjacency: edge j -> i at [i, j]; softmax over incoming edges of i.
    # (add_self_loops=False; duplicate edges are deduped by the dense mask.)
    adj = jnp.zeros((n_pad, n_pad), jnp.float32).at[dst, src].set(1.0)
    # Additive mask (bf16 halves the N^2 HBM stream): 0 on edges, -1e9 else.
    adjb = ((adj - 1.0) * MASK_BIAS).astype(jnp.bfloat16)
    # Tile-level "any edge" table for pl.when skipping of all-masked tiles.
    edge_tile = (adj.reshape(nt, tile, nt, tile).sum(axis=(1, 3)) > 0
                 ).astype(jnp.int32)

    pair_dtype = _pair_dtype_for_device()

    # Layer 1: GATv2Conv(input -> hidden, heads, concat=True) + bias + ReLU.
    h1 = gatv2_layer(x_pad, adjb, edge_tile, params1, heads=heads,
                     head_dim=hidden, mean_heads=False, tile=tile,
                     pair_dtype=pair_dtype)              # (N_pad, heads*hidden)
    h = jnp.concatenate([x_pad, h1], axis=-1)

    # Layer 2: GATv2Conv(-> embed, heads, concat=False -> mean) + bias + ReLU.
    h2 = gatv2_layer(h, adjb, edge_tile, params2, heads=heads, head_dim=embed,
                     mean_heads=True, tile=tile, pair_dtype=pair_dtype)

    return jnp.concatenate([x, h2[:n]], axis=-1)         # (N, input + embed)


if __name__ == "__main__":
    # Small, module-consistent shapes.
    N = 16
    INPUT_SIZE = 8
    HIDDEN = 32
    EMBED = 64
    HEADS = 3

    key = jax.random.PRNGKey(0)
    kx, ke, k1, k2 = jax.random.split(key, 4)

    x = jax.random.normal(kx, (N, INPUT_SIZE), jnp.float32)

    # Bidirectional ring + a few extra edges (every node has an incoming edge).
    idx = jnp.arange(N, dtype=jnp.int32)
    ring_src = jnp.concatenate([idx, (idx + 1) % N])
    ring_dst = jnp.concatenate([(idx + 1) % N, idx])
    extra_src = jax.random.randint(ke, (8,), 0, N, dtype=jnp.int32)
    extra_dst = (extra_src + 5) % N
    edge_index = jnp.stack([jnp.concatenate([ring_src, extra_src]),
                            jnp.concatenate([ring_dst, extra_dst])])   # (2, 40)

    params1 = init_gatv2_params(k1, INPUT_SIZE, HIDDEN, HEADS, concat=True)
    params2 = init_gatv2_params(k2, HIDDEN * HEADS + INPUT_SIZE, EMBED, HEADS,
                                concat=False)

    out = gat_encoder_forward(x, edge_index, params1, params2,
                              heads=HEADS, hidden=HIDDEN, embed=EMBED)
    out = jax.block_until_ready(out)
    assert out.shape == (N, INPUT_SIZE + EMBED)
    assert bool(jnp.all(jnp.isfinite(out)))
    print("KERNEL_OK")
</pallas_src>

<mosaic_0001>
module attributes {stable_mosaic.version = 11 : i64} {
  func.func @_gatv2_attn_kernel(%arg0: i32, %arg1: i32, %arg2: memref<1x1xi32, #tpu.memory_space<smem>>, %arg3: memref<3x32x16xf32, #tpu.memory_space<vmem>>, %arg4: memref<3x32x16xf32, #tpu.memory_space<vmem>>, %arg5: memref<3x16x32xbf16, #tpu.memory_space<vmem>>, %arg6: memref<3x32x1xf32, #tpu.memory_space<vmem>>, %arg7: memref<3x16x1xf32, #tpu.memory_space<vmem>>, %arg8: memref<3x1x16xf32, #tpu.memory_space<vmem>>, %arg9: memref<16x16xbf16, #tpu.memory_space<vmem>>, %arg10: memref<3x1x32xf32, #tpu.memory_space<vmem>>, %arg11: memref<3x16x32xf32, #tpu.memory_space<vmem>>, %arg12: memref<3x16x1xf32, #tpu.memory_space<vmem>>, %arg13: memref<3x16x1xf32, #tpu.memory_space<vmem>>, %arg14: memref<3x16x32xf32, #tpu.memory_space<vmem>>) attributes {dimension_semantics = [#tpu.dimension_semantics<parallel>, #tpu.dimension_semantics<arbitrary>], iteration_bounds = array<i64: 1, 1>, scalar_prefetch = 1 : i64, scratch_operands = 3 : i64, tpu.core_type = #tpu.core_type<tc>, window_params = [{transform_indices = @transform_0, window_bounds = array<i64: 3, 32, 16>}, {transform_indices = @transform_1, window_bounds = array<i64: 3, 32, 16>}, {transform_indices = @transform_2, window_bounds = array<i64: 3, 16, 32>}, {pipeline_mode = #tpu.pipeline_mode<synchronous>, transform_indices = @transform_3, window_bounds = array<i64: 3, 32, 1>}, {transform_indices = @transform_4, window_bounds = array<i64: 3, 16, 1>}, {transform_indices = @transform_5, window_bounds = array<i64: 3, 1, 16>}, {transform_indices = @transform_6, window_bounds = array<i64: 16, 16>}, {pipeline_mode = #tpu.pipeline_mode<synchronous>, transform_indices = @transform_7, window_bounds = array<i64: 3, 1, 32>}, {transform_indices = @transform_8, window_bounds = array<i64: 3, 16, 32>}]} {
    %c0_i32 = arith.constant 0 : i32
    %0 = arith.cmpi eq, %arg1, %c0_i32 : i32
    %1 = arith.extui %0 : i1 to i32
    %c0_i32_0 = arith.constant 0 : i32
    %2 = arith.cmpi ne, %1, %c0_i32_0 : i32
    scf.if %2 {
      %cst = arith.constant -1.000000e+30 : f32
      %12 = vector.broadcast %cst : f32 to vector<3x16x1xf32>
      %c0 = arith.constant 0 : index
      %c0_5 = arith.constant 0 : index
      %c0_6 = arith.constant 0 : index
      %13 = vector.load %arg12[%c0, %c0_5, %c0_6] : memref<3x16x1xf32, #tpu.memory_space<vmem>>, vector<3x16x1xf32>
      tpu.vector_store %arg12[%c0, %c0_5, %c0_6], %12 {strides = array<i32>} : memref<3x16x1xf32, #tpu.memory_space<vmem>>, vector<3x16x1xf32>,
      %cst_7 = arith.constant 0.000000e+00 : f32
      %14 = vector.broadcast %cst_7 : f32 to vector<3x16x1xf32>
      %c0_8 = arith.constant 0 : index
      %c0_9 = arith.constant 0 : index
      %c0_10 = arith.constant 0 : index
      %15 = vector.load %arg13[%c0_8, %c0_9, %c0_10] : memref<3x16x1xf32, #tpu.memory_space<vmem>>, vector<3x16x1xf32>
      tpu.vector_store %arg13[%c0_8, %c0_9, %c0_10], %14 {strides = array<i32>} : memref<3x16x1xf32, #tpu.memory_space<vmem>>, vector<3x16x1xf32>,
      %cst_11 = arith.constant 0.000000e+00 : f32
      %16 = vector.broadcast %cst_11 : f32 to vector<3x16x32xf32>
      %c0_12 = arith.constant 0 : index
      %c0_13 = arith.constant 0 : index
      %c0_14 = arith.constant 0 : index
      %17 = vector.load %arg14[%c0_12, %c0_13, %c0_14] : memref<3x16x32xf32, #tpu.memory_space<vmem>>, vector<3x16x32xf32>
      tpu.vector_store %arg14[%c0_12, %c0_13, %c0_14], %16 {strides = array<i32>} : memref<3x16x32xf32, #tpu.memory_space<vmem>>, vector<3x16x32xf32>,
    } else {
    }
    %3 = arith.index_cast %arg0 : i32 to index
    %4 = arith.index_cast %arg1 : i32 to index
    %5 = memref.load %arg2[%3, %4] : memref<1x1xi32, #tpu.memory_space<smem>>
    %c0_i32_1 = arith.constant 0 : i32
    %6 = arith.cmpi ne, %5, %c0_i32_1 : i32
    %7 = arith.extui %6 : i1 to i32
    %c0_i32_2 = arith.constant 0 : i32
    %8 = arith.cmpi ne, %7, %c0_i32_2 : i32
    scf.if %8 {
      %c0 = arith.constant 0 : index
      %c0_5 = arith.constant 0 : index
      %12 = vector.load %arg9[%c0, %c0_5] : memref<16x16xbf16, #tpu.memory_space<vmem>>, vector<16x16xbf16>
      %13 = arith.extf %12 : vector<16x16xbf16> to vector<16x16xf32>
      %c0_i32_6 = arith.constant 0 : i32
      %c3_i32 = arith.constant 3 : i32
      %14 = arith.addi %c0_i32_6, %c3_i32 : i32
      %c1_i32 = arith.constant 1 : i32
      scf.for %arg15 = %c0_i32_6 to %14 step %c1_i32  : i32 {
        %c1_i32_8 = arith.constant 1 : i32
        %15 = arith.muli %arg15, %c1_i32_8 : i32
        %c0_i32_9 = arith.constant 0 : i32
        %16 = arith.addi %c0_i32_9, %15 : i32
        %17 = arith.index_cast %16 : i32 to index
        %c0_10 = arith.constant 0 : index
        %c0_11 = arith.constant 0 : index
        %18 = vector.load %arg3[%17, %c0_10, %c0_11] : memref<3x32x16xf32, #tpu.memory_space<vmem>>, vector<1x32x16xf32>
        %19 = vector.shape_cast %18 : vector<1x32x16xf32> to vector<32x16xf32>
        %20 = arith.index_cast %16 : i32 to index
        %c0_12 = arith.constant 0 : index
        %c0_13 = arith.constant 0 : index
        %21 = vector.load %arg4[%20, %c0_12, %c0_13] : memref<3x32x16xf32, #tpu.memory_space<vmem>>, vector<1x32x16xf32>
        %22 = vector.shape_cast %21 : vector<1x32x16xf32> to vector<32x16xf32>
        %23 = arith.index_cast %16 : i32 to index
        %c0_14 = arith.constant 0 : index
        %c0_15 = arith.constant 0 : index
        %24 = vector.load %arg6[%23, %c0_14, %c0_15] : memref<3x32x1xf32, #tpu.memory_space<vmem>>, vector<1x32x1xf32>
        %25 = vector.shape_cast %24 : vector<1x32x1xf32> to vector<32x1xf32>
        %26 = vector.shape_cast %19 : vector<32x16xf32> to vector<32x16x1xf32>
        %27 = vector.shape_cast %22 : vector<32x16xf32> to vector<32x1x16xf32>
        %28 = vector.broadcast %26 : vector<32x16x1xf32> to vector<32x16x16xf32>
        %29 = vector.broadcast %27 : vector<32x1x16xf32> to vector<32x16x16xf32>
        %30 = arith.addf %28, %29 : vector<32x16x16xf32>
        %cst = arith.constant 0.000000e+00 : f32
        %31 = vector.broadcast %cst : f32 to vector<32x16x16xf32>
        %32 = arith.maximumf %30, %31 : vector<32x16x16xf32>
        %33 = vector.shape_cast %25 : vector<32x1xf32> to vector<32x1x1xf32>
        %34 = vector.broadcast %33 : vector<32x1x1xf32> to vector<32x16x16xf32>
        %35 = arith.mulf %32, %34 : vector<32x16x16xf32>
        %cst_16 = arith.constant dense<0.000000e+00> : vector<16x16xf32>
        %36 = vector.multi_reduction <add>, %35, %cst_16 [0] : vector<32x16x16xf32> to vector<16x16xf32>
        %37 = arith.index_cast %16 : i32 to index
        %c0_17 = arith.constant 0 : index
        %c0_18 = arith.constant 0 : index
        %38 = vector.load %arg7[%37, %c0_17, %c0_18] : memref<3x16x1xf32, #tpu.memory_space<vmem>>, vector<1x16x1xf32>
        %39 = vector.shape_cast %38 : vector<1x16x1xf32> to vector<16x1xf32>
        %40 = vector.broadcast %39 : vector<16x1xf32> to vector<16x16xf32>
        %41 = arith.addf %36, %40 : vector<16x16xf32>
        %42 = arith.index_cast %16 : i32 to index
        %c0_19 = arith.constant 0 : index
        %c0_20 = arith.constant 0 : index
        %43 = vector.load %arg8[%42, %c0_19, %c0_20] : memref<3x1x16xf32, #tpu.memory_space<vmem>>, vector<1x1x16xf32>
        %44 = vector.shape_cast %43 : vector<1x1x16xf32> to vector<1x16xf32>
        %45 = vector.broadcast %44 : vector<1x16xf32> to vector<16x16xf32>
        %46 = arith.addf %41, %45 : vector<16x16xf32>
        %47 = arith.addf %46, %13 : vector<16x16xf32>
        %48 = arith.index_cast %16 : i32 to index
        %c0_21 = arith.constant 0 : index
        %c0_22 = arith.constant 0 : index
        %49 = vector.load %arg12[%48, %c0_21, %c0_22] : memref<3x16x1xf32, #tpu.memory_space<vmem>>, vector<1x16x1xf32>
        %50 = vector.shape_cast %49 : vector<1x16x1xf32> to vector<16x1xf32>
        %cst_23 = arith.constant dense<0xFF800000> : vector<16xf32>
        %51 = vector.multi_reduction <maximumf>, %47, %cst_23 [1] : vector<16x16xf32> to vector<16xf32>
        %52 = vector.shape_cast %51 : vector<16xf32> to vector<16x1xf32>
        %53 = arith.maximumf %50, %52 : vector<16x1xf32>
        %54 = arith.subf %50, %53 : vector<16x1xf32>
        %55 = math.exp %54 : vector<16x1xf32>
        %56 = vector.broadcast %53 : vector<16x1xf32> to vector<16x16xf32>
        %57 = arith.subf %47, %56 : vector<16x16xf32>
        %58 = math.exp %57 : vector<16x16xf32>
        %59 = arith.index_cast %16 : i32 to index
        %c0_24 = arith.constant 0 : index
        %c0_25 = arith.constant 0 : index
        %60 = vector.load %arg13[%59, %c0_24, %c0_25] : memref<3x16x1xf32, #tpu.memory_space<vmem>>, vector<1x16x1xf32>
        %61 = vector.shape_cast %60 : vector<1x16x1xf32> to vector<16x1xf32>
        %62 = arith.mulf %55, %61 : vector<16x1xf32>
        %cst_26 = arith.constant dense<0.000000e+00> : vector<16xf32>
        %63 = vector.multi_reduction <add>, %58, %cst_26 [1] : vector<16x16xf32> to vector<16xf32>
        %64 = vector.shape_cast %63 : vector<16xf32> to vector<16x1xf32>
        %65 = arith.addf %62, %64 : vector<16x1xf32>
        %66 = arith.index_cast %16 : i32 to index
        %c0_27 = arith.constant 0 : index
        %c0_28 = arith.constant 0 : index
        %67 = vector.load %arg13[%66, %c0_27, %c0_28] : memref<3x16x1xf32, #tpu.memory_space<vmem>>, vector<1x16x1xf32>
        %68 = vector.shape_cast %67 : vector<1x16x1xf32> to vector<16x1xf32>
        %69 = vector.shape_cast %65 : vector<16x1xf32> to vector<1x16x1xf32>
        tpu.vector_store %arg13[%66, %c0_27, %c0_28], %69 {strides = array<i32>} : memref<3x16x1xf32, #tpu.memory_space<vmem>>, vector<1x16x1xf32>,
        %70 = arith.index_cast %16 : i32 to index
        %c0_29 = arith.constant 0 : index
        %c0_30 = arith.constant 0 : index
        %71 = vector.load %arg14[%70, %c0_29, %c0_30] : memref<3x16x32xf32, #tpu.memory_space<vmem>>, vector<1x16x32xf32>
        %72 = vector.shape_cast %71 : vector<1x16x32xf32> to vector<16x32xf32>
        %73 = vector.broadcast %55 : vector<16x1xf32> to vector<16x32xf32>
        %74 = arith.mulf %73, %72 : vector<16x32xf32>
        %75 = arith.truncf %58 : vector<16x16xf32> to vector<16x16xbf16>
        %76 = arith.index_cast %16 : i32 to index
        %c0_31 = arith.constant 0 : index
        %c0_32 = arith.constant 0 : index
        %77 = vector.load %arg5[%76, %c0_31, %c0_32] : memref<3x16x32xbf16, #tpu.memory_space<vmem>>, vector<1x16x32xbf16>
        %78 = vector.shape_cast %77 : vector<1x16x32xbf16> to vector<16x32xbf16>
        %cst_33 = arith.constant dense<0.000000e+00> : vector<16x32xf32>
        %79 = tpu.matmul %75, %78, %cst_33 {dimension_numbers = #tpu.dot_dimension_numbers<[1], [0], [0], [1], [0, 0, 1, 1], [], []>} : vector<16x16xbf16>, vector<16x32xbf16>, vector<16x32xf32> -> vector<16x32xf32>
        %80 = arith.addf %74, %79 : vector<16x32xf32>
        %81 = arith.index_cast %16 : i32 to index
        %c0_34 = arith.constant 0 : index
        %c0_35 = arith.constant 0 : index
        %82 = vector.load %arg14[%81, %c0_34, %c0_35] : memref<3x16x32xf32, #tpu.memory_space<vmem>>, vector<1x16x32xf32>
        %83 = vector.shape_cast %82 : vector<1x16x32xf32> to vector<16x32xf32>
        %84 = vector.shape_cast %80 : vector<16x32xf32> to vector<1x16x32xf32>
        tpu.vector_store %arg14[%81, %c0_34, %c0_35], %84 {strides = array<i32>} : memref<3x16x32xf32, #tpu.memory_space<vmem>>, vector<1x16x32xf32>,
        %85 = arith.index_cast %16 : i32 to index
        %c0_36 = arith.constant 0 : index
        %c0_37 = arith.constant 0 : index
        %86 = vector.load %arg12[%85, %c0_36, %c0_37] : memref<3x16x1xf32, #tpu.memory_space<vmem>>, vector<1x16x1xf32>
        %87 = vector.shape_cast %86 : vector<1x16x1xf32> to vector<16x1xf32>
        %88 = vector.shape_cast %53 : vector<16x1xf32> to vector<1x16x1xf32>
        tpu.vector_store %arg12[%85, %c0_36, %c0_37], %88 {strides = array<i32>} : memref<3x16x1xf32, #tpu.memory_space<vmem>>, vector<1x16x1xf32>,
      }
      %c3_i32_7 = arith.constant 3 : i32
    } else {
    }
    %c0_i32_3 = arith.constant 0 : i32
    %9 = arith.cmpi eq, %arg1, %c0_i32_3 : i32
    %10 = arith.extui %9 : i1 to i32
    %c0_i32_4 = arith.constant 0 : i32
    %11 = arith.cmpi ne, %10, %c0_i32_4 : i32
    scf.if %11 {
      %c0 = arith.constant 0 : index
      %c0_5 = arith.constant 0 : index
      %c0_6 = arith.constant 0 : index
      %12 = vector.load %arg12[%c0, %c0_5, %c0_6] : memref<3x16x1xf32, #tpu.memory_space<vmem>>, vector<1x16x1xf32>
      %13 = vector.shape_cast %12 : vector<1x16x1xf32> to vector<16x1xf32>
      %cst = arith.constant -1.000000e+08 : f32
      %14 = vector.broadcast %cst : f32 to vector<16x1xf32>
      %15 = arith.cmpf ogt, %13, %14 : vector<16x1xf32>
      %c0_7 = arith.constant 0 : index
      %c0_8 = arith.constant 0 : index
      %c0_9 = arith.constant 0 : index
      %16 = vector.load %arg13[%c0_7, %c0_8, %c0_9] : memref<3x16x1xf32, #tpu.memory_space<vmem>>, vector<1x16x1xf32>
      %17 = vector.shape_cast %16 : vector<1x16x1xf32> to vector<16x1xf32>
      %18 = tpu.reciprocal %17 {approx = true} : vector<16x1xf32> -> vector<16x1xf32>
      %c0_10 = arith.constant 0 : index
      %c0_11 = arith.constant 0 : index
      %c0_12 = arith.constant 0 : index
      %19 = vector.load %arg14[%c0_10, %c0_11, %c0_12] : memref<3x16x32xf32, #tpu.memory_space<vmem>>, vector<1x16x32xf32>
      %20 = vector.shape_cast %19 : vector<1x16x32xf32> to vector<16x32xf32>
      %21 = vector.broadcast %18 : vector<16x1xf32> to vector<16x32xf32>
      %22 = arith.mulf %20, %21 : vector<16x32xf32>
      %cst_13 = arith.constant 0.000000e+00 : f32
      %23 = vector.shape_cast %15 : vector<16x1xi1> to vector<16x1xi1>
      %24 = vector.broadcast %23 : vector<16x1xi1> to vector<16x32xi1>
      %25 = vector.broadcast %cst_13 : f32 to vector<16x32xf32>
      %26 = arith.select %24, %22, %25 : vector<16x32xi1>, vector<16x32xf32>
      %c0_14 = arith.constant 0 : index
      %c0_15 = arith.constant 0 : index
      %c0_16 = arith.constant 0 : index
      %27 = vector.load %arg10[%c0_14, %c0_15, %c0_16] : memref<3x1x32xf32, #tpu.memory_space<vmem>>, vector<1x1x32xf32>
      %28 = vector.shape_cast %27 : vector<1x1x32xf32> to vector<1x32xf32>
      %29 = vector.broadcast %28 : vector<1x32xf32> to vector<16x32xf32>
      %30 = arith.addf %26, %29 : vector<16x32xf32>
      %cst_17 = arith.constant 0.000000e+00 : f32
      %31 = vector.broadcast %cst_17 : f32 to vector<16x32xf32>
      %32 = arith.maximumf %30, %31 : vector<16x32xf32>
      %c0_18 = arith.constant 0 : index
      %c0_19 = arith.constant 0 : index
      %c0_20 = arith.constant 0 : index
      %33 = vector.load %arg11[%c0_18, %c0_19, %c0_20] : memref<3x16x32xf32, #tpu.memory_space<vmem>>, vector<1x16x32xf32>
      %34 = vector.shape_cast %33 : vector<1x16x32xf32> to vector<16x32xf32>
      %35 = vector.shape_cast %32 : vector<16x32xf32> to vector<1x16x32xf32>
      tpu.vector_store %arg11[%c0_18, %c0_19, %c0_20], %35 {strides = array<i32>} : memref<3x16x32xf32, #tpu.memory_space<vmem>>, vector<1x16x32xf32>,
      %c1 = arith.constant 1 : index
      %c0_21 = arith.constant 0 : index
      %c0_22 = arith.constant 0 : index
      %36 = vector.load %arg12[%c1, %c0_21, %c0_22] : memref<3x16x1xf32, #tpu.memory_space<vmem>>, vector<1x16x1xf32>
      %37 = vector.shape_cast %36 : vector<1x16x1xf32> to vector<16x1xf32>
      %cst_23 = arith.constant -1.000000e+08 : f32
      %38 = vector.broadcast %cst_23 : f32 to vector<16x1xf32>
      %39 = arith.cmpf ogt, %37, %38 : vector<16x1xf32>
      %c1_24 = arith.constant 1 : index
      %c0_25 = arith.constant 0 : index
      %c0_26 = arith.constant 0 : index
      %40 = vector.load %arg13[%c1_24, %c0_25, %c0_26] : memref<3x16x1xf32, #tpu.memory_space<vmem>>, vector<1x16x1xf32>
      %41 = vector.shape_cast %40 : vector<1x16x1xf32> to vector<16x1xf32>
      %42 = tpu.reciprocal %41 {approx = true} : vector<16x1xf32> -> vector<16x1xf32>
      %c1_27 = arith.constant 1 : index
      %c0_28 = arith.constant 0 : index
      %c0_29 = arith.constant 0 : index
      %43 = vector.load %arg14[%c1_27, %c0_28, %c0_29] : memref<3x16x32xf32, #tpu.memory_space<vmem>>, vector<1x16x32xf32>
      %44 = vector.shape_cast %43 : vector<1x16x32xf32> to vector<16x32xf32>
      %45 = vector.broadcast %42 : vector<16x1xf32> to vector<16x32xf32>
      %46 = arith.mulf %44, %45 : vector<16x32xf32>
      %cst_30 = arith.constant 0.000000e+00 : f32
      %47 = vector.shape_cast %39 : vector<16x1xi1> to vector<16x1xi1>
      %48 = vector.broadcast %47 : vector<16x1xi1> to vector<16x32xi1>
      %49 = vector.broadcast %cst_30 : f32 to vector<16x32xf32>
      %50 = arith.select %48, %46, %49 : vector<16x32xi1>, vector<16x32xf32>
      %c1_31 = arith.constant 1 : index
      %c0_32 = arith.constant 0 : index
      %c0_33 = arith.constant 0 : index
      %51 = vector.load %arg10[%c1_31, %c0_32, %c0_33] : memref<3x1x32xf32, #tpu.memory_space<vmem>>, vector<1x1x32xf32>
      %52 = vector.shape_cast %51 : vector<1x1x32xf32> to vector<1x32xf32>
      %53 = vector.broadcast %52 : vector<1x32xf32> to vector<16x32xf32>
      %54 = arith.addf %50, %53 : vector<16x32xf32>
      %cst_34 = arith.constant 0.000000e+00 : f32
      %55 = vector.broadcast %cst_34 : f32 to vector<16x32xf32>
      %56 = arith.maximumf %54, %55 : vector<16x32xf32>
      %c1_35 = arith.constant 1 : index
      %c0_36 = arith.constant 0 : index
      %c0_37 = arith.constant 0 : index
      %57 = vector.load %arg11[%c1_35, %c0_36, %c0_37] : memref<3x16x32xf32, #tpu.memory_space<vmem>>, vector<1x16x32xf32>
      %58 = vector.shape_cast %57 : vector<1x16x32xf32> to vector<16x32xf32>
      %59 = vector.shape_cast %56 : vector<16x32xf32> to vector<1x16x32xf32>
      tpu.vector_store %arg11[%c1_35, %c0_36, %c0_37], %59 {strides = array<i32>} : memref<3x16x32xf32, #tpu.memory_space<vmem>>, vector<1x16x32xf32>,
      %c2 = arith.constant 2 : index
      %c0_38 = arith.constant 0 : index
      %c0_39 = arith.constant 0 : index
      %60 = vector.load %arg12[%c2, %c0_38, %c0_39] : memref<3x16x1xf32, #tpu.memory_space<vmem>>, vector<1x16x1xf32>
      %61 = vector.shape_cast %60 : vector<1x16x1xf32> to vector<16x1xf32>
      %cst_40 = arith.constant -1.000000e+08 : f32
      %62 = vector.broadcast %cst_40 : f32 to vector<16x1xf32>
      %63 = arith.cmpf ogt, %61, %62 : vector<16x1xf32>
      %c2_41 = arith.constant 2 : index
      %c0_42 = arith.constant 0 : index
      %c0_43 = arith.constant 0 : index
      %64 = vector.load %arg13[%c2_41, %c0_42, %c0_43] : memref<3x16x1xf32, #tpu.memory_space<vmem>>, vector<1x16x1xf32>
      %65 = vector.shape_cast %64 : vector<1x16x1xf32> to vector<16x1xf32>
      %66 = tpu.reciprocal %65 {approx = true} : vector<16x1xf32> -> vector<16x1xf32>
      %c2_44 = arith.constant 2 : index
      %c0_45 = arith.constant 0 : index
      %c0_46 = arith.constant 0 : index
      %67 = vector.load %arg14[%c2_44, %c0_45, %c0_46] : memref<3x16x32xf32, #tpu.memory_space<vmem>>, vector<1x16x32xf32>
      %68 = vector.shape_cast %67 : vector<1x16x32xf32> to vector<16x32xf32>
      %69 = vector.broadcast %66 : vector<16x1xf32> to vector<16x32xf32>
      %70 = arith.mulf %68, %69 : vector<16x32xf32>
      %cst_47 = arith.constant 0.000000e+00 : f32
      %71 = vector.shape_cast %63 : vector<16x1xi1> to vector<16x1xi1>
      %72 = vector.broadcast %71 : vector<16x1xi1> to vector<16x32xi1>
      %73 = vector.broadcast %cst_47 : f32 to vector<16x32xf32>
      %74 = arith.select %72, %70, %73 : vector<16x32xi1>, vector<16x32xf32>
      %c2_48 = arith.constant 2 : index
      %c0_49 = arith.constant 0 : index
      %c0_50 = arith.constant 0 : index
      %75 = vector.load %arg10[%c2_48, %c0_49, %c0_50] : memref<3x1x32xf32, #tpu.memory_space<vmem>>, vector<1x1x32xf32>
      %76 = vector.shape_cast %75 : vector<1x1x32xf32> to vector<1x32xf32>
      %77 = vector.broadcast %76 : vector<1x32xf32> to vector<16x32xf32>
      %78 = arith.addf %74, %77 : vector<16x32xf32>
      %cst_51 = arith.constant 0.000000e+00 : f32
      %79 = vector.broadcast %cst_51 : f32 to vector<16x32xf32>
      %80 = arith.maximumf %78, %79 : vector<16x32xf32>
      %c2_52 = arith.constant 2 : index
      %c0_53 = arith.constant 0 : index
      %c0_54 = arith.constant 0 : index
      %81 = vector.load %arg11[%c2_52, %c0_53, %c0_54] : memref<3x16x32xf32, #tpu.memory_space<vmem>>, vector<1x16x32xf32>
      %82 = vector.shape_cast %81 : vector<1x16x32xf32> to vector<16x32xf32>
      %83 = vector.shape_cast %80 : vector<16x32xf32> to vector<1x16x32xf32>
      tpu.vector_store %arg11[%c2_52, %c0_53, %c0_54], %83 {strides = array<i32>} : memref<3x16x32xf32, #tpu.memory_space<vmem>>, vector<1x16x32xf32>,
    } else {
    }
    return
  }
  func.func @transform_0(%arg0: i32, %arg1: i32, %arg2: memref<1x1xi32, #tpu.memory_space<smem>>) -> (i32, i32, i32) {
    %c0_i32 = arith.constant 0 : i32
    %c0_i32_0 = arith.constant 0 : i32
    %c0_i32_1 = arith.constant 0 : i32
    return %c0_i32, %c0_i32_0, %arg0 : i32, i32, i32
  }
  func.func @transform_1(%arg0: i32, %arg1: i32, %arg2: memref<1x1xi32, #tpu.memory_space<smem>>) -> (i32, i32, i32) {
    %c0_i32 = arith.constant 0 : i32
    %c0_i32_0 = arith.constant 0 : i32
    %c0_i32_1 = arith.constant 0 : i32
    return %c0_i32, %c0_i32_0, %arg1 : i32, i32, i32
  }
  func.func @transform_2(%arg0: i32, %arg1: i32, %arg2: memref<1x1xi32, #tpu.memory_space<smem>>) -> (i32, i32, i32) {
    %c0_i32 = arith.constant 0 : i32
    %c0_i32_0 = arith.constant 0 : i32
    %c0_i32_1 = arith.constant 0 : i32
    return %c0_i32, %arg1, %c0_i32_0 : i32, i32, i32
  }
  func.func @transform_3(%arg0: i32, %arg1: i32, %arg2: memref<1x1xi32, #tpu.memory_space<smem>>) -> (i32, i32, i32) {
    %c0_i32 = arith.constant 0 : i32
    %c0_i32_0 = arith.constant 0 : i32
    %c0_i32_1 = arith.constant 0 : i32
    %c0_i32_2 = arith.constant 0 : i32
    return %c0_i32, %c0_i32_0, %c0_i32_1 : i32, i32, i32
  }
  func.func @transform_4(%arg0: i32, %arg1: i32, %arg2: memref<1x1xi32, #tpu.memory_space<smem>>) -> (i32, i32, i32) {
    %c0_i32 = arith.constant 0 : i32
    %c0_i32_0 = arith.constant 0 : i32
    %c0_i32_1 = arith.constant 0 : i32
    return %c0_i32, %arg0, %c0_i32_0 : i32, i32, i32
  }
  func.func @transform_5(%arg0: i32, %arg1: i32, %arg2: memref<1x1xi32, #tpu.memory_space<smem>>) -> (i32, i32, i32) {
    %c0_i32 = arith.constant 0 : i32
    %c0_i32_0 = arith.constant 0 : i32
    %c0_i32_1 = arith.constant 0 : i32
    return %c0_i32, %c0_i32_0, %arg1 : i32, i32, i32
  }
  func.func @transform_6(%arg0: i32, %arg1: i32, %arg2: memref<1x1xi32, #tpu.memory_space<smem>>) -> (i32, i32) {
    %c0_i32 = arith.constant 0 : i32
    return %arg0, %arg1 : i32, i32
  }
  func.func @transform_7(%arg0: i32, %arg1: i32, %arg2: memref<1x1xi32, #tpu.memory_space<smem>>) -> (i32, i32, i32) {
    %c0_i32 = arith.constant 0 : i32
    %c0_i32_0 = arith.constant 0 : i32
    %c0_i32_1 = arith.constant 0 : i32
    %c0_i32_2 = arith.constant 0 : i32
    return %c0_i32, %c0_i32_0, %c0_i32_1 : i32, i32, i32
  }
  func.func @transform_8(%arg0: i32, %arg1: i32, %arg2: memref<1x1xi32, #tpu.memory_space<smem>>) -> (i32, i32, i32) {
    %c0_i32 = arith.constant 0 : i32
    %c0_i32_0 = arith.constant 0 : i32
    %c0_i32_1 = arith.constant 0 : i32
    return %c0_i32, %arg0, %c0_i32_0 : i32, i32, i32
  }
}

</mosaic_0001>

<llo_original>
// kernel: tpu_custom_call.1
$region0: #{tpu_custom_call.1}
  #allocation0 [shape = 'u32[]', space=smem, size = 0x4, offset = 0x4, fixed_abs, tag = 'smem constant byte address 0x4 - core index']
  #allocation1 [shape = 'u32[144,128]{1,0:T(1,128)}', space=vmem, size = 0x12000, scoped, tag = 'internal scratch']
  #allocation2 [shape = 'f32[3,16,1]{2,1,0:T(8,128)}', space=vmem, size = 0x6000, scoped, tag = 'scratch operand']
  #allocation3 [shape = 'f32[3,16,1]{2,1,0:T(8,128)}', space=vmem, size = 0x6000, scoped, tag = 'scratch operand']
  #allocation4 [shape = 'f32[3,16,32]{2,1,0:T(8,128)}', space=vmem, size = 0x6000, scoped, tag = 'scratch operand']
  #allocation5 [shape = 's32[1]{0}', space=sflag, size = 0x4, scoped, tag = 'scoped memory for tpu_custom_call.1']
  #allocation6 [shape = 's32[1,1]{1,0:T(1,128)S(6)}', space=smem, size = 0x200, scoped, tag = 'prefetched SMEM operand 0']
  %s0 = inlined_call_operand.<no memory space> [shape: s32[1,1], index: 0, kind: input, shape index: {}]
  %s1 = inlined_call_operand.vmem [shape: f32[3,32,16], index: 1, kind: input, shape index: {}]
  %s2 = inlined_call_operand.vmem [shape: f32[3,32,16], index: 2, kind: input, shape index: {}]
  %s3 = inlined_call_operand.vmem [shape: bf16[3,16,32], index: 3, kind: input, shape index: {}]
  %s4 = inlined_call_operand.vmem [shape: f32[3,32,1], index: 4, kind: input, shape index: {}]
  %s5 = inlined_call_operand.vmem [shape: f32[3,16,1], index: 5, kind: input, shape index: {}]
  %s6 = inlined_call_operand.vmem [shape: f32[3,1,16], index: 6, kind: input, shape index: {}]
  %s7 = inlined_call_operand.vmem [shape: bf16[16,16], index: 7, kind: input, shape index: {}]
  %s8 = inlined_call_operand.vmem [shape: f32[3,1,32], index: 8, kind: input, shape index: {}]
  %s9 = inlined_call_operand.hbm [shape: f32[3,16,32], index: 9, kind: output, shape index: {}]
  %s10 = sld [smem:[#allocation0]]
  $region61: #{tpu_custom_call.1} parent=0
    _
  %s12 = ssub.s32 1, %s10
  %s13 = scalar_select 0, %s12, %s10
  %14 = sst [smem:[#allocation6]] %s0
  $region1: #{tpu_custom_call.1} parent=0
    #allocation7 [shape = 'u8[24576]{0}', space=vmem, size = 0x6000, scoped, tag = 'output window, operand 0, single buffered']
    #allocation8 [shape = 's32[1]{0}', space=sflag, size = 0x4, scoped, tag = 'scoped memory for tpu_custom_call.1']
    %15 = vsyncpa [#allocation8], 0
    // Predicated region
    $region2: #{tpu_custom_call.1} parent=1 // pred_check
      _
    $region3: #{tpu_custom_call.1} parent=1 // pred_check_branch
      %17 = sbr.rel (0) target = $region5
    $region4: #{tpu_custom_call.1} parent=1 // pred_region
      _
    $region5: #{tpu_custom_call.1} parent=1 // pred_fallthru
      _
    // Predicated region
    $region6: #{tpu_custom_call.1} parent=1 // pred_check
      _
    $region7: #{tpu_custom_call.1} parent=1 // pred_check_branch
      %19 = sbr.rel (0) target = $region9
    $region8: #{tpu_custom_call.1} parent=1 // pred_region
      _
    $region9: #{tpu_custom_call.1} parent=1 // pred_fallthru
      _
    // Predicated region
    $region10: #{tpu_custom_call.1} parent=1 // pred_check
      _
    $region11: #{tpu_custom_call.1} parent=1 // pred_check_branch
      %21 = sbr.rel (0) target = $region13
    $region12: #{tpu_custom_call.1} parent=1 // pred_region
      _
    $region13: #{tpu_custom_call.1} parent=1 // pred_fallthru
      _
    // Predicated region
    $region14: #{tpu_custom_call.1} parent=1 // pred_check
      _
    $region15: #{tpu_custom_call.1} parent=1 // pred_check_branch
      %23 = sbr.rel (0) target = $region17
    $region16: #{tpu_custom_call.1} parent=1 // pred_region
      _
    $region17: #{tpu_custom_call.1} parent=1 // pred_fallthru
      _
    // Predicated region
    $region18: #{tpu_custom_call.1} parent=1 // pred_check
      _
    $region19: #{tpu_custom_call.1} parent=1 // pred_check_branch
      %25 = sbr.rel (0) target = $region21
    $region20: #{tpu_custom_call.1} parent=1 // pred_region
      _
    $region21: #{tpu_custom_call.1} parent=1 // pred_fallthru
      _
    // Predicated region
    $region22: #{tpu_custom_call.1} parent=1 // pred_check
      _
    $region23: #{tpu_custom_call.1} parent=1 // pred_check_branch
      %27 = sbr.rel (0) target = $region25
    $region24: #{tpu_custom_call.1} parent=1 // pred_region
      _
    $region25: #{tpu_custom_call.1} parent=1 // pred_fallthru
      _
    // Predicated region
    $region26: #{tpu_custom_call.1} parent=1 // pred_check
      _
    $region27: #{tpu_custom_call.1} parent=1 // pred_check_branch
      %29 = sbr.rel (0) target = $region29
    $region28: #{tpu_custom_call.1} parent=1 // pred_region
      _
    $region29: #{tpu_custom_call.1} parent=1 // pred_fallthru
      _
    // Predicated region
    $region30: #{tpu_custom_call.1} parent=1 // pred_check
      _
    $region31: #{tpu_custom_call.1} parent=1 // pred_check_branch
      %31 = sbr.rel (0) target = $region33
    $region32: #{tpu_custom_call.1} parent=1 // pred_region
      _
    $region33: #{tpu_custom_call.1} parent=1 // pred_fallthru
      _
    %p33 = scmp.eq.s32.totalorder 0, 0
    // Predicated region
    $region34: #{tpu_custom_call.1} parent=1 // pred_check
      %p34 = pneg %p33
    $region35: #{tpu_custom_call.1} parent=1 // pred_check_branch
      %36 = sbr.rel (%p34) target = $region37
    $region36: #{tpu_custom_call.1} parent=1 // pred_region
      %vm37 = vcmask 7168
      %38 = vst.msk [vmem:[#allocation2] sm:$0xff] %vm37, -1e+30
      %39 = vst.msk [vmem:[#allocation2 + $0x8] sm:$0xff] %vm37, -1e+30
      %40 = vst.msk [vmem:[#allocation2 + $0x10] sm:$0xff] %vm37, -1e+30
      %41 = vst.msk [vmem:[#allocation2 + $0x18] sm:$0xff] %vm37, -1e+30
      %42 = vst.msk [vmem:[#allocation2 + $0x20] sm:$0xff] %vm37, -1e+30
      %43 = vst.msk [vmem:[#allocation2 + $0x28] sm:$0xff] %vm37, -1e+30
      %44 = vst.msk [vmem:[#allocation3] sm:$0xff] %vm37, 0.0
      %45 = vst.msk [vmem:[#allocation3 + $0x8] sm:$0xff] %vm37, 0.0
      %46 = vst.msk [vmem:[#allocation3 + $0x10] sm:$0xff] %vm37, 0.0
      %47 = vst.msk [vmem:[#allocation3 + $0x18] sm:$0xff] %vm37, 0.0
      %48 = vst.msk [vmem:[#allocation3 + $0x20] sm:$0xff] %vm37, 0.0
      %49 = vst.msk [vmem:[#allocation3 + $0x28] sm:$0xff] %vm37, 0.0
      %vm50 = vcmask 261120
      %51 = vst.msk [vmem:[#allocation4] sm:$0xff] %vm50, 0.0
      %52 = vst.msk [vmem:[#allocation4 + $0x8] sm:$0xff] %vm50, 0.0
      %53 = vst.msk [vmem:[#allocation4 + $0x10] sm:$0xff] %vm50, 0.0
      %54 = vst.msk [vmem:[#allocation4 + $0x18] sm:$0xff] %vm50, 0.0
      %55 = vst.msk [vmem:[#allocation4 + $0x20] sm:$0xff] %vm50, 0.0
      %56 = vst.msk [vmem:[#allocation4 + $0x28] sm:$0xff] %vm50, 0.0
    $region37: #{tpu_custom_call.1} parent=1 // pred_fallthru
      _
    %s57 = sadd.s32 0, 0
    %s58 = smul.u32 %s57, 128
    %s59 = sadd.s32 %s58, 0
    %s60 = sld [smem:[#allocation6 + %s59]]
    %p61 = scmp.ne.s32.totalorder %s60, 0
    // Predicated region
    $region38: #{tpu_custom_call.1} parent=1 // pred_check
      %p62 = pneg %p61
    $region39: #{tpu_custom_call.1} parent=1 // pred_check_branch
      %64 = sbr.rel (%p62) target = $region41
    $region40: #{tpu_custom_call.1} parent=1 // pred_region
      %v65 = vld [vmem:[%s7] sm:$0xf]
      %v66 = vld [vmem:[%s7 + $0x4] sm:$0xf]
      %v67 = vunpack.c.l.bf16 %v65
      %v68 = vunpack.c.l.bf16 %v66
      loop: start=0, step=1, limit=3
      $region42: #{tpu_custom_call.1} parent=40 // loop_pre_header
        _
      $region43: #{tpu_custom_call.1} parent=40 // loop_header
        %s70 = sphi 0, %s74
        %p71 = scmp.ge.s32.totalorder %s70, 3
      $region44: #{tpu_custom_call.1} parent=40 // loop_header_branch
        %73 = sbr.rel (%p71) target = $region48
      $region45: #{tpu_custom_call.1} parent=40 // loop_body
        %s75 = smul.u32 %s70, 32
        %s76 = scalar_lea.vmem %s1, %s75
        %v77 = vld [vmem:[%s76] sm:$0xff]
        %v78 = vld [vmem:[%s76 + $0x8] sm:$0xff]
        %v79 = vld [vmem:[%s76 + $0x10] sm:$0xff]
        %v80 = vld [vmem:[%s76 + $0x18] sm:$0xff]
        %s81 = scalar_lea.vmem %s2, %s75
        %v82 = vld [vmem:[%s81] sm:$0xff]
        %v83 = vld [vmem:[%s81 + $0x8] sm:$0xff]
        %v84 = vld [vmem:[%s81 + $0x10] sm:$0xff]
        %v85 = vld [vmem:[%s81 + $0x18] sm:$0xff]
        %s86 = scalar_lea.vmem %s4, %s75
        %v87 = vld [vmem:[%s86] sm:$0xff]
        %v88 = vld [vmem:[%s86 + $0x8] sm:$0xff]
        %v89 = vld [vmem:[%s86 + $0x10] sm:$0xff]
        %v90 = vld [vmem:[%s86 + $0x18] sm:$0xff]
        %v91 = vlaneseq
        %v92 = vshrl.u32 %v91, 7
        %v93 = vsub.s32 0, %v92
        %v94 = vrot.slane %v77, %v93
        %96 = vbcast.lane.b32.xlu0 %v94, 256
        %v97 = vpop.permute.xlu0 %96
        %s99 = sor.u32 256, 8
        %100 = vbcast.lane.b32.xlu0 %v94, %s99
        %v101 = vpop.permute.xlu0 %100
        %v102 = vlaneseq
        %v103 = vshrl.u32 %v102, 7
        %v104 = vsub.s32 1, %v103
        %v105 = vrot.slane %v77, %v104
        %107 = vbcast.lane.b32.xlu0 %v105, 256
        %v108 = vpop.permute.xlu0 %107
        %s110 = sor.u32 256, 8
        %111 = vbcast.lane.b32.xlu0 %v105, %s110
        %v112 = vpop.permute.xlu0 %111
        %v113 = vlaneseq
        %v114 = vshrl.u32 %v113, 7
        %v115 = vsub.s32 2, %v114
        %v116 = vrot.slane %v77, %v115
        %118 = vbcast.lane.b32.xlu0 %v116, 256
        %v119 = vpop.permute.xlu0 %118
        %s121 = sor.u32 256, 8
        %122 = vbcast.lane.b32.xlu0 %v116, %s121
        %v123 = vpop.permute.xlu0 %122
        %v124 = vlaneseq
        %v125 = vshrl.u32 %v124, 7
        %v126 = vsub.s32 3, %v125
        %v127 = vrot.slane %v77, %v126
        %129 = vbcast.lane.b32.xlu0 %v127, 256
        %v130 = vpop.permute.xlu0 %129
        %s132 = sor.u32 256, 8
        %133 = vbcast.lane.b32.xlu0 %v127, %s132
        %v134 = vpop.permute.xlu0 %133
        %v135 = vlaneseq
        %v136 = vshrl.u32 %v135, 7
        %v137 = vsub.s32 4, %v136
        %v138 = vrot.slane %v77, %v137
        %140 = vbcast.lane.b32.xlu0 %v138, 256
        %v141 = vpop.permute.xlu0 %140
        %s143 = sor.u32 256, 8
        %144 = vbcast.lane.b32.xlu0 %v138, %s143
        %v145 = vpop.permute.xlu0 %144
        %v146 = vlaneseq
        %v147 = vshrl.u32 %v146, 7
        %v148 = vsub.s32 5, %v147
        %v149 = vrot.slane %v77, %v148
        %151 = vbcast.lane.b32.xlu0 %v149, 256
        %v152 = vpop.permute.xlu0 %151
        %s154 = sor.u32 256, 8
        %155 = vbcast.lane.b32.xlu0 %v149, %s154
        %v156 = vpop.permute.xlu0 %155
        %v157 = vlaneseq
        %v158 = vshrl.u32 %v157, 7
        %v159 = vsub.s32 6, %v158
        %v160 = vrot.slane %v77, %v159
        %162 = vbcast.lane.b32.xlu0 %v160, 256
        %v163 = vpop.permute.xlu0 %162
        %s165 = sor.u32 256, 8
        %166 = vbcast.lane.b32.xlu0 %v160, %s165
        %v167 = vpop.permute.xlu0 %166
        %v168 = vlaneseq
        %v169 = vshrl.u32 %v168, 7
        %v170 = vsub.s32 7, %v169
        %v171 = vrot.slane %v77, %v170
        %173 = vbcast.lane.b32.xlu0 %v171, 256
        %v174 = vpop.permute.xlu0 %173
        %s176 = sor.u32 256, 8
        %177 = vbcast.lane.b32.xlu0 %v171, %s176
        %v178 = vpop.permute.xlu0 %177
        %v179 = vlaneseq
        %v180 = vshrl.u32 %v179, 7
        %v181 = vsub.s32 0, %v180
        %v182 = vrot.slane %v78, %v181
        %184 = vbcast.lane.b32.xlu0 %v182, 256
        %v185 = vpop.permute.xlu0 %184
        %s187 = sor.u32 256, 8
        %188 = vbcast.lane.b32.xlu0 %v182, %s187
        %v189 = vpop.permute.xlu0 %188
        %v190 = vlaneseq
        %v191 = vshrl.u32 %v190, 7
        %v192 = vsub.s32 1, %v191
        %v193 = vrot.slane %v78, %v192
        %195 = vbcast.lane.b32.xlu0 %v193, 256
        %v196 = vpop.permute.xlu0 %195
        %s198 = sor.u32 256, 8
        %199 = vbcast.lane.b32.xlu0 %v193, %s198
        %v200 = vpop.permute.xlu0 %199
        %v201 = vlaneseq
        %v202 = vshrl.u32 %v201, 7
        %v203 = vsub.s32 2, %v202
        %v204 = vrot.slane %v78, %v203
        %206 = vbcast.lane.b32.xlu0 %v204, 256
        %v207 = vpop.permute.xlu0 %206
        %s209 = sor.u32 256, 8
        %210 = vbcast.lane.b32.xlu0 %v204, %s209
        %v211 = vpop.permute.xlu0 %210
        %v212 = vlaneseq
        %v213 = vshrl.u32 %v212, 7
        %v214 = vsub.s32 3, %v213
        %v215 = vrot.slane %v78, %v214
        %217 = vbcast.lane.b32.xlu0 %v215, 256
        %v218 = vpop.permute.xlu0 %217
        %s220 = sor.u32 256, 8
        %221 = vbcast.lane.b32.xlu0 %v215, %s220
        %v222 = vpop.permute.xlu0 %221
        %v223 = vlaneseq
        %v224 = vshrl.u32 %v223, 7
        %v225 = vsub.s32 4, %v224
        %v226 = vrot.slane %v78, %v225
        %228 = vbcast.lane.b32.xlu0 %v226, 256
        %v229 = vpop.permute.xlu0 %228
        %s231 = sor.u32 256, 8
        %232 = vbcast.lane.b32.xlu0 %v226, %s231
        %v233 = vpop.permute.xlu0 %232
        %v234 = vlaneseq
        %v235 = vshrl.u32 %v234, 7
        %v236 = vsub.s32 5, %v235
        %v237 = vrot.slane %v78, %v236
        %239 = vbcast.lane.b32.xlu0 %v237, 256
        %v240 = vpop.permute.xlu0 %239
        %s242 = sor.u32 256, 8
        %243 = vbcast.lane.b32.xlu0 %v237, %s242
        %v244 = vpop.permute.xlu0 %243
        %v245 = vlaneseq
        %v246 = vshrl.u32 %v245, 7
        %v247 = vsub.s32 6, %v246
        %v248 = vrot.slane %v78, %v247
        %250 = vbcast.lane.b32.xlu0 %v248, 256
        %v251 = vpop.permute.xlu0 %250
        %s253 = sor.u32 256, 8
        %254 = vbcast.lane.b32.xlu0 %v248, %s253
        %v255 = vpop.permute.xlu0 %254
        %v256 = vlaneseq
        %v257 = vshrl.u32 %v256, 7
        %v258 = vsub.s32 7, %v257
        %v259 = vrot.slane %v78, %v258
        %261 = vbcast.lane.b32.xlu0 %v259, 256
        %v262 = vpop.permute.xlu0 %261
        %s264 = sor.u32 256, 8
        %265 = vbcast.lane.b32.xlu0 %v259, %s264
        %v266 = vpop.permute.xlu0 %265
        %v267 = vlaneseq
        %v268 = vshrl.u32 %v267, 7
        %v269 = vsub.s32 0, %v268
        %v270 = vrot.slane %v79, %v269
        %272 = vbcast.lane.b32.xlu0 %v270, 256
        %v273 = vpop.permute.xlu0 %272
        %s275 = sor.u32 256, 8
        %276 = vbcast.lane.b32.xlu0 %v270, %s275
        %v277 = vpop.permute.xlu0 %276
        %v278 = vlaneseq
        %v279 = vshrl.u32 %v278, 7
        %v280 = vsub.s32 1, %v279
        %v281 = vrot.slane %v79, %v280
        %283 = vbcast.lane.b32.xlu0 %v281, 256
        %v284 = vpop.permute.xlu0 %283
        %s286 = sor.u32 256, 8
        %287 = vbcast.lane.b32.xlu0 %v281, %s286
        %v288 = vpop.permute.xlu0 %287
        %v289 = vlaneseq
        %v290 = vshrl.u32 %v289, 7
        %v291 = vsub.s32 2, %v290
        %v292 = vrot.slane %v79, %v291
        %294 = vbcast.lane.b32.xlu0 %v292, 256
        %v295 = vpop.permute.xlu0 %294
        %s297 = sor.u32 256, 8
        %298 = vbcast.lane.b32.xlu0 %v292, %s297
        %v299 = vpop.permute.xlu0 %298
        %v300 = vlaneseq
        %v301 = vshrl.u32 %v300, 7
        %v302 = vsub.s32 3, %v301
        %v303 = vrot.slane %v79, %v302
        %305 = vbcast.lane.b32.xlu0 %v303, 256
        %v306 = vpop.permute.xlu0 %305
        %s308 = sor.u32 256, 8
        %309 = vbcast.lane.b32.xlu0 %v303, %s308
        %v310 = vpop.permute.xlu0 %309
        %v311 = vlaneseq
        %v312 = vshrl.u32 %v311, 7
        %v313 = vsub.s32 4, %v312
        %v314 = vrot.slane %v79, %v313
        %316 = vbcast.lane.b32.xlu0 %v314, 256
        %v317 = vpop.permute.xlu0 %316
        %s319 = sor.u32 256, 8
        %320 = vbcast.lane.b32.xlu0 %v314, %s319
        %v321 = vpop.permute.xlu0 %320
        %v322 = vlaneseq
        %v323 = vshrl.u32 %v322, 7
        %v324 = vsub.s32 5, %v323
        %v325 = vrot.slane %v79, %v324
        %327 = vbcast.lane.b32.xlu0 %v325, 256
        %v328 = vpop.permute.xlu0 %327
        %s330 = sor.u32 256, 8
        %331 = vbcast.lane.b32.xlu0 %v325, %s330
        %v332 = vpop.permute.xlu0 %331
        %v333 = vlaneseq
        %v334 = vshrl.u32 %v333, 7
        %v335 = vsub.s32 6, %v334
        %v336 = vrot.slane %v79, %v335
        %338 = vbcast.lane.b32.xlu0 %v336, 256
        %v339 = vpop.permute.xlu0 %338
        %s341 = sor.u32 256, 8
        %342 = vbcast.lane.b32.xlu0 %v336, %s341
        %v343 = vpop.permute.xlu0 %342
        %v344 = vlaneseq
        %v345 = vshrl.u32 %v344, 7
        %v346 = vsub.s32 7, %v345
        %v347 = vrot.slane %v79, %v346
        %349 = vbcast.lane.b32.xlu0 %v347, 256
        %v350 = vpop.permute.xlu0 %349
        %s352 = sor.u32 256, 8
        %353 = vbcast.lane.b32.xlu0 %v347, %s352
        %v354 = vpop.permute.xlu0 %353
        %v355 = vlaneseq
        %v356 = vshrl.u32 %v355, 7
        %v357 = vsub.s32 0, %v356
        %v358 = vrot.slane %v80, %v357
        %360 = vbcast.lane.b32.xlu0 %v358, 256
        %v361 = vpop.permute.xlu0 %360
        %s363 = sor.u32 256, 8
        %364 = vbcast.lane.b32.xlu0 %v358, %s363
        %v365 = vpop.permute.xlu0 %364
        %v366 = vlaneseq
        %v367 = vshrl.u32 %v366, 7
        %v368 = vsub.s32 1, %v367
        %v369 = vrot.slane %v80, %v368
        %371 = vbcast.lane.b32.xlu0 %v369, 256
        %v372 = vpop.permute.xlu0 %371
        %s374 = sor.u32 256, 8
        %375 = vbcast.lane.b32.xlu0 %v369, %s374
        %v376 = vpop.permute.xlu0 %375
        %v377 = vlaneseq
        %v378 = vshrl.u32 %v377, 7
        %v379 = vsub.s32 2, %v378
        %v380 = vrot.slane %v80, %v379
        %382 = vbcast.lane.b32.xlu0 %v380, 256
        %v383 = vpop.permute.xlu0 %382
        %s385 = sor.u32 256, 8
        %386 = vbcast.lane.b32.xlu0 %v380, %s385
        %v387 = vpop.permute.xlu0 %386
        %v388 = vlaneseq
        %v389 = vshrl.u32 %v388, 7
        %v390 = vsub.s32 3, %v389
        %v391 = vrot.slane %v80, %v390
        %393 = vbcast.lane.b32.xlu0 %v391, 256
        %v394 = vpop.permute.xlu0 %393
        %s396 = sor.u32 256, 8
        %397 = vbcast.lane.b32.xlu0 %v391, %s396
        %v398 = vpop.permute.xlu0 %397
        %v399 = vlaneseq
        %v400 = vshrl.u32 %v399, 7
        %v401 = vsub.s32 4, %v400
        %v402 = vrot.slane %v80, %v401
        %404 = vbcast.lane.b32.xlu0 %v402, 256
        %v405 = vpop.permute.xlu0 %404
        %s407 = sor.u32 256, 8
        %408 = vbcast.lane.b32.xlu0 %v402, %s407
        %v409 = vpop.permute.xlu0 %408
        %v410 = vlaneseq
        %v411 = vshrl.u32 %v410, 7
        %v412 = vsub.s32 5, %v411
        %v413 = vrot.slane %v80, %v412
        %415 = vbcast.lane.b32.xlu0 %v413, 256
        %v416 = vpop.permute.xlu0 %415
        %s418 = sor.u32 256, 8
        %419 = vbcast.lane.b32.xlu0 %v413, %s418
        %v420 = vpop.permute.xlu0 %419
        %v421 = vlaneseq
        %v422 = vshrl.u32 %v421, 7
        %v423 = vsub.s32 6, %v422
        %v424 = vrot.slane %v80, %v423
        %426 = vbcast.lane.b32.xlu0 %v424, 256
        %v427 = vpop.permute.xlu0 %426
        %s429 = sor.u32 256, 8
        %430 = vbcast.lane.b32.xlu0 %v424, %s429
        %v431 = vpop.permute.xlu0 %430
        %v432 = vlaneseq
        %v433 = vshrl.u32 %v432, 7
        %v434 = vsub.s32 7, %v433
        %v435 = vrot.slane %v80, %v434
        %437 = vbcast.lane.b32.xlu0 %v435, 256
        %v438 = vpop.permute.xlu0 %437
        %s440 = sor.u32 256, 8
        %441 = vbcast.lane.b32.xlu0 %v435, %s440
        %v442 = vpop.permute.xlu0 %441
        %v447 = vcombine.high %v82, %v82
        %v449 = vunpack.c.l.s4 1966171168
        %v450 = vunpack.c.0.s8 %v449
        %v451 = vlaneseq
        %v452 = vshrl.u32 %v451, 7
        %v453 = vsub.s32 %v450, %v452
        %v454 = vrot.slane %v82, %v453
        %v456 = vunpack.c.l.s4 1966171168
        %v457 = vunpack.c.0.s8 %v456
        %v458 = vlaneseq
        %v459 = vshrl.u32 %v458, 7
        %v460 = vsub.s32 %v457, %v459
        %v461 = vrot.slane %v447, %v460
        %v462 = vcombine.high %v454, %v454
        %v463 = vcombine.high %v461, %v461
        %v465 = vunpack.c.l.s4 1966171168
        %v466 = vunpack.c.0.s8 %v465
        %v467 = vlaneseq
        %v468 = vshrl.u32 %v467, 7
        %v469 = vsub.s32 %v466, %v468
        %v470 = vrot.slane %v454, %v469
        %v472 = vunpack.c.l.s4 1966171168
        %v473 = vunpack.c.0.s8 %v472
        %v474 = vlaneseq
        %v475 = vshrl.u32 %v474, 7
        %v476 = vsub.s32 %v473, %v475
        %v477 = vrot.slane %v461, %v476
        %v479 = vunpack.c.l.s4 1966171168
        %v480 = vunpack.c.0.s8 %v479
        %v481 = vlaneseq
        %v482 = vshrl.u32 %v481, 7
        %v483 = vsub.s32 %v480, %v482
        %v484 = vrot.slane %v462, %v483
        %v486 = vunpack.c.l.s4 1966171168
        %v487 = vunpack.c.0.s8 %v486
        %v488 = vlaneseq
        %v489 = vshrl.u32 %v488, 7
        %v490 = vsub.s32 %v487, %v489
        %v491 = vrot.slane %v463, %v490
        %v492 = vcombine.high %v470, %v470
        %v493 = vcombine.high %v477, %v477
        %v494 = vcombine.high %v484, %v484
        %v495 = vcombine.high %v491, %v491
        %v496 = vcombine.high %v83, %v83
        %v498 = vunpack.c.l.s4 1966171168
        %v499 = vunpack.c.0.s8 %v498
        %v500 = vlaneseq
        %v501 = vshrl.u32 %v500, 7
        %v502 = vsub.s32 %v499, %v501
        %v503 = vrot.slane %v83, %v502
        %v505 = vunpack.c.l.s4 1966171168
        %v506 = vunpack.c.0.s8 %v505
        %v507 = vlaneseq
        %v508 = vshrl.u32 %v507, 7
        %v509 = vsub.s32 %v506, %v508
        %v510 = vrot.slane %v496, %v509
        %v511 = vcombine.high %v503, %v503
        %v512 = vcombine.high %v510, %v510
        %v514 = vunpack.c.l.s4 1966171168
        %v515 = vunpack.c.0.s8 %v514
        %v516 = vlaneseq
        %v517 = vshrl.u32 %v516, 7
        %v518 = vsub.s32 %v515, %v517
        %v519 = vrot.slane %v503, %v518
        %v521 = vunpack.c.l.s4 1966171168
        %v522 = vunpack.c.0.s8 %v521
        %v523 = vlaneseq
        %v524 = vshrl.u32 %v523, 7
        %v525 = vsub.s32 %v522, %v524
        %v526 = vrot.slane %v510, %v525
        %v528 = vunpack.c.l.s4 1966171168
        %v529 = vunpack.c.0.s8 %v528
        %v530 = vlaneseq
        %v531 = vshrl.u32 %v530, 7
        %v532 = vsub.s32 %v529, %v531
        %v533 = vrot.slane %v511, %v532
        %v535 = vunpack.c.l.s4 1966171168
        %v536 = vunpack.c.0.s8 %v535
        %v537 = vlaneseq
        %v538 = vshrl.u32 %v537, 7
        %v539 = vsub.s32 %v536, %v538
        %v540 = vrot.slane %v512, %v539
        %v541 = vcombine.high %v519, %v519
        %v542 = vcombine.high %v526, %v526
        %v543 = vcombine.high %v533, %v533
        %v544 = vcombine.high %v540, %v540
        %v545 = vcombine.high %v84, %v84
        %v547 = vunpack.c.l.s4 1966171168
        %v548 = vunpack.c.0.s8 %v547
        %v549 = vlaneseq
        %v550 = vshrl.u32 %v549, 7
        %v551 = vsub.s32 %v548, %v550
        %v552 = vrot.slane %v84, %v551
        %v554 = vunpack.c.l.s4 1966171168
        %v555 = vunpack.c.0.s8 %v554
        %v556 = vlaneseq
        %v557 = vshrl.u32 %v556, 7
        %v558 = vsub.s32 %v555, %v557
        %v559 = vrot.slane %v545, %v558
        %v560 = vcombine.high %v552, %v552
        %v561 = vcombine.high %v559, %v559
        %v563 = vunpack.c.l.s4 1966171168
        %v564 = vunpack.c.0.s8 %v563
        %v565 = vlaneseq
        %v566 = vshrl.u32 %v565, 7
        %v567 = vsub.s32 %v564, %v566
        %v568 = vrot.slane %v552, %v567
        %v570 = vunpack.c.l.s4 1966171168
        %v571 = vunpack.c.0.s8 %v570
        %v572 = vlaneseq
        %v573 = vshrl.u32 %v572, 7
        %v574 = vsub.s32 %v571, %v573
        %v575 = vrot.slane %v559, %v574
        %v577 = vunpack.c.l.s4 1966171168
        %v578 = vunpack.c.0.s8 %v577
        %v579 = vlaneseq
        %v580 = vshrl.u32 %v579, 7
        %v581 = vsub.s32 %v578, %v580
        %v582 = vrot.slane %v560, %v581
        %v584 = vunpack.c.l.s4 1966171168
        %v585 = vunpack.c.0.s8 %v584
        %v586 = vlaneseq
        %v587 = vshrl.u32 %v586, 7
        %v588 = vsub.s32 %v585, %v587
        %v589 = vrot.slane %v561, %v588
        %v590 = vcombine.high %v568, %v568
        %v591 = vcombine.high %v575, %v575
        %v592 = vcombine.high %v582, %v582
        %v593 = vcombine.high %v589, %v589
        %v594 = vcombine.high %v85, %v85
        %v596 = vunpack.c.l.s4 1966171168
        %v597 = vunpack.c.0.s8 %v596
        %v598 = vlaneseq
        %v599 = vshrl.u32 %v598, 7
        %v600 = vsub.s32 %v597, %v599
        %v601 = vrot.slane %v85, %v600
        %v603 = vunpack.c.l.s4 1966171168
        %v604 = vunpack.c.0.s8 %v603
        %v605 = vlaneseq
        %v606 = vshrl.u32 %v605, 7
        %v607 = vsub.s32 %v604, %v606
        %v608 = vrot.slane %v594, %v607
        %v609 = vcombine.high %v601, %v601
        %v610 = vcombine.high %v608, %v608
        %v612 = vunpack.c.l.s4 1966171168
        %v613 = vunpack.c.0.s8 %v612
        %v614 = vlaneseq
        %v615 = vshrl.u32 %v614, 7
        %v616 = vsub.s32 %v613, %v615
        %v617 = vrot.slane %v601, %v616
        %v619 = vunpack.c.l.s4 1966171168
        %v620 = vunpack.c.0.s8 %v619
        %v621 = vlaneseq
        %v622 = vshrl.u32 %v621, 7
        %v623 = vsub.s32 %v620, %v622
        %v624 = vrot.slane %v608, %v623
        %v626 = vunpack.c.l.s4 1966171168
        %v627 = vunpack.c.0.s8 %v626
        %v628 = vlaneseq
        %v629 = vshrl.u32 %v628, 7
        %v630 = vsub.s32 %v627, %v629
        %v631 = vrot.slane %v609, %v630
        %v633 = vunpack.c.l.s4 1966171168
        %v634 = vunpack.c.0.s8 %v633
        %v635 = vlaneseq
        %v636 = vshrl.u32 %v635, 7
        %v637 = vsub.s32 %v634, %v636
        %v638 = vrot.slane %v610, %v637
        %v639 = vcombine.high %v617, %v617
        %v640 = vcombine.high %v624, %v624
        %v641 = vcombine.high %v631, %v631
        %v642 = vcombine.high %v638, %v638
        %v643 = vlaneseq
        %v644 = vshrl.u32 %v643, 7
        %v645 = vsub.s32 0, %v644
        %v646 = vrot.slane %v470, %v645
        %v647 = vlaneseq
        %v648 = vshrl.u32 %v647, 7
        %v649 = vsub.s32 0, %v648
        %v650 = vrot.slane %v484, %v649
        %v651 = vlaneseq
        %v652 = vshrl.u32 %v651, 7
        %v653 = vsub.s32 0, %v652
        %v654 = vrot.slane %v492, %v653
        %v655 = vlaneseq
        %v656 = vshrl.u32 %v655, 7
        %v657 = vsub.s32 0, %v656
        %v658 = vrot.slane %v494, %v657
        %v659 = vlaneseq
        %v660 = vshrl.u32 %v659, 7
        %v661 = vsub.s32 0, %v660
        %v662 = vrot.slane %v477, %v661
        %v663 = vlaneseq
        %v664 = vshrl.u32 %v663, 7
        %v665 = vsub.s32 0, %v664
        %v666 = vrot.slane %v491, %v665
        %v667 = vlaneseq
        %v668 = vshrl.u32 %v667, 7
        %v669 = vsub.s32 0, %v668
        %v670 = vrot.slane %v493, %v669
        %v671 = vlaneseq
        %v672 = vshrl.u32 %v671, 7
        %v673 = vsub.s32 0, %v672
        %v674 = vrot.slane %v495, %v673
        %v675 = vlaneseq
        %v676 = vshrl.u32 %v675, 7
        %v677 = vsub.s32 0, %v676
        %v678 = vrot.slane %v519, %v677
        %v679 = vlaneseq
        %v680 = vshrl.u32 %v679, 7
        %v681 = vsub.s32 0, %v680
        %v682 = vrot.slane %v533, %v681
        %v683 = vlaneseq
        %v684 = vshrl.u32 %v683, 7
        %v685 = vsub.s32 0, %v684
        %v686 = vrot.slane %v541, %v685
        %v687 = vlaneseq
        %v688 = vshrl.u32 %v687, 7
        %v689 = vsub.s32 0, %v688
        %v690 = vrot.slane %v543, %v689
        %v691 = vlaneseq
        %v692 = vshrl.u32 %v691, 7
        %v693 = vsub.s32 0, %v692
        %v694 = vrot.slane %v526, %v693
        %v695 = vlaneseq
        %v696 = vshrl.u32 %v695, 7
        %v697 = vsub.s32 0, %v696
        %v698 = vrot.slane %v540, %v697
        %v699 = vlaneseq
        %v700 = vshrl.u32 %v699, 7
        %v701 = vsub.s32 0, %v700
        %v702 = vrot.slane %v542, %v701
        %v703 = vlaneseq
        %v704 = vshrl.u32 %v703, 7
        %v705 = vsub.s32 0, %v704
        %v706 = vrot.slane %v544, %v705
        %v707 = vlaneseq
        %v708 = vshrl.u32 %v707, 7
        %v709 = vsub.s32 0, %v708
        %v710 = vrot.slane %v568, %v709
        %v711 = vlaneseq
        %v712 = vshrl.u32 %v711, 7
        %v713 = vsub.s32 0, %v712
        %v714 = vrot.slane %v582, %v713
        %v715 = vlaneseq
        %v716 = vshrl.u32 %v715, 7
        %v717 = vsub.s32 0, %v716
        %v718 = vrot.slane %v590, %v717
        %v719 = vlaneseq
        %v720 = vshrl.u32 %v719, 7
        %v721 = vsub.s32 0, %v720
        %v722 = vrot.slane %v592, %v721
        %v723 = vlaneseq
        %v724 = vshrl.u32 %v723, 7
        %v725 = vsub.s32 0, %v724
        %v726 = vrot.slane %v575, %v725
        %v727 = vlaneseq
        %v728 = vshrl.u32 %v727, 7
        %v729 = vsub.s32 0, %v728
        %v730 = vrot.slane %v589, %v729
        %v731 = vlaneseq
        %v732 = vshrl.u32 %v731, 7
        %v733 = vsub.s32 0, %v732
        %v734 = vrot.slane %v591, %v733
        %v735 = vlaneseq
        %v736 = vshrl.u32 %v735, 7
        %v737 = vsub.s32 0, %v736
        %v738 = vrot.slane %v593, %v737
        %v739 = vlaneseq
        %v740 = vshrl.u32 %v739, 7
        %v741 = vsub.s32 0, %v740
        %v742 = vrot.slane %v617, %v741
        %v743 = vlaneseq
        %v744 = vshrl.u32 %v743, 7
        %v745 = vsub.s32 0, %v744
        %v746 = vrot.slane %v631, %v745
        %v747 = vlaneseq
        %v748 = vshrl.u32 %v747, 7
        %v749 = vsub.s32 0, %v748
        %v750 = vrot.slane %v639, %v749
        %v751 = vlaneseq
        %v752 = vshrl.u32 %v751, 7
        %v753 = vsub.s32 0, %v752
        %v754 = vrot.slane %v641, %v753
        %v755 = vlaneseq
        %v756 = vshrl.u32 %v755, 7
        %v757 = vsub.s32 0, %v756
        %v758 = vrot.slane %v624, %v757
        %v759 = vlaneseq
        %v760 = vshrl.u32 %v759, 7
        %v761 = vsub.s32 0, %v760
        %v762 = vrot.slane %v638, %v761
        %v763 = vlaneseq
        %v764 = vshrl.u32 %v763, 7
        %v765 = vsub.s32 0, %v764
        %v766 = vrot.slane %v640, %v765
        %v767 = vlaneseq
        %v768 = vshrl.u32 %v767, 7
        %v769 = vsub.s32 0, %v768
        %v770 = vrot.slane %v642, %v769
        %v803 = vadd.f32 %v97, %v646
        %v804 = vadd.f32 %v101, %v646
        %v805 = vadd.f32 %v108, %v650
        %v806 = vadd.f32 %v112, %v650
        %v807 = vadd.f32 %v119, %v654
        %v808 = vadd.f32 %v123, %v654
        %v809 = vadd.f32 %v130, %v658
        %v810 = vadd.f32 %v134, %v658
        %v811 = vadd.f32 %v141, %v662
        %v812 = vadd.f32 %v145, %v662
        %v813 = vadd.f32 %v152, %v666
        %v814 = vadd.f32 %v156, %v666
        %v815 = vadd.f32 %v163, %v670
        %v816 = vadd.f32 %v167, %v670
        %v817 = vadd.f32 %v174, %v674
        %v818 = vadd.f32 %v178, %v674
        %v819 = vadd.f32 %v185, %v678
        %v820 = vadd.f32 %v189, %v678
        %v821 = vadd.f32 %v196, %v682
        %v822 = vadd.f32 %v200, %v682
        %v823 = vadd.f32 %v207, %v686
        %v824 = vadd.f32 %v211, %v686
        %v825 = vadd.f32 %v218, %v690
        %v826 = vadd.f32 %v222, %v690
        %v827 = vadd.f32 %v229, %v694
        %v828 = vadd.f32 %v233, %v694
        %v829 = vadd.f32 %v240, %v698
        %v830 = vadd.f32 %v244, %v698
        %v831 = vadd.f32 %v251, %v702
        %v832 = vadd.f32 %v255, %v702
        %v833 = vadd.f32 %v262, %v706
        %v834 = vadd.f32 %v266, %v706
        %v835 = vadd.f32 %v273, %v710
        %v836 = vadd.f32 %v277, %v710
        %v837 = vadd.f32 %v284, %v714
        %v838 = vadd.f32 %v288, %v714
        %v839 = vadd.f32 %v295, %v718
        %v840 = vadd.f32 %v299, %v718
        %v841 = vadd.f32 %v306, %v722
        %v842 = vadd.f32 %v310, %v722
        %v843 = vadd.f32 %v317, %v726
        %v844 = vadd.f32 %v321, %v726
        %v845 = vadd.f32 %v328, %v730
        %v846 = vadd.f32 %v332, %v730
        %v847 = vadd.f32 %v339, %v734
        %v848 = vadd.f32 %v343, %v734
        %v849 = vadd.f32 %v350, %v738
        %v850 = vadd.f32 %v354, %v738
        %v851 = vadd.f32 %v361, %v742
        %v852 = vadd.f32 %v365, %v742
        %v853 = vadd.f32 %v372, %v746
        %v854 = vadd.f32 %v376, %v746
        %v855 = vadd.f32 %v383, %v750
        %v856 = vadd.f32 %v387, %v750
        %v857 = vadd.f32 %v394, %v754
        %v858 = vadd.f32 %v398, %v754
        %v859 = vadd.f32 %v405, %v758
        %v860 = vadd.f32 %v409, %v758
        %v861 = vadd.f32 %v416, %v762
        %v862 = vadd.f32 %v420, %v762
        %v863 = vadd.f32 %v427, %v766
        %v864 = vadd.f32 %v431, %v766
        %v865 = vadd.f32 %v438, %v770
        %v866 = vadd.f32 %v442, %v770
        %v867 = vmax.f32 %v803, 0.0
        %v868 = vmax.f32 %v804, 0.0
        %v869 = vmax.f32 %v805, 0.0
        %v870 = vmax.f32 %v806, 0.0
        %v871 = vmax.f32 %v807, 0.0
        %v872 = vmax.f32 %v808, 0.0
        %v873 = vmax.f32 %v809, 0.0
        %v874 = vmax.f32 %v810, 0.0
        %v875 = vmax.f32 %v811, 0.0
        %v876 = vmax.f32 %v812, 0.0
        %v877 = vmax.f32 %v813, 0.0
        %v878 = vmax.f32 %v814, 0.0
        %v879 = vmax.f32 %v815, 0.0
        %v880 = vmax.f32 %v816, 0.0
        %v881 = vmax.f32 %v817, 0.0
        %v882 = vmax.f32 %v818, 0.0
        %v883 = vmax.f32 %v819, 0.0
        %v884 = vmax.f32 %v820, 0.0
        %v885 = vmax.f32 %v821, 0.0
        %v886 = vmax.f32 %v822, 0.0
        %v887 = vmax.f32 %v823, 0.0
        %v888 = vmax.f32 %v824, 0.0
        %v889 = vmax.f32 %v825, 0.0
        %v890 = vmax.f32 %v826, 0.0
        %v891 = vmax.f32 %v827, 0.0
        %v892 = vmax.f32 %v828, 0.0
        %v893 = vmax.f32 %v829, 0.0
        %v894 = vmax.f32 %v830, 0.0
        %v895 = vmax.f32 %v831, 0.0
        %v896 = vmax.f32 %v832, 0.0
        %v897 = vmax.f32 %v833, 0.0
        %v898 = vmax.f32 %v834, 0.0
        %v899 = vmax.f32 %v835, 0.0
        %v900 = vmax.f32 %v836, 0.0
        %v901 = vmax.f32 %v837, 0.0
        %v902 = vmax.f32 %v838, 0.0
        %v903 = vmax.f32 %v839, 0.0
        %v904 = vmax.f32 %v840, 0.0
        %v905 = vmax.f32 %v841, 0.0
        %v906 = vmax.f32 %v842, 0.0
        %v907 = vmax.f32 %v843, 0.0
        %v908 = vmax.f32 %v844, 0.0
        %v909 = vmax.f32 %v845, 0.0
        %v910 = vmax.f32 %v846, 0.0
        %v911 = vmax.f32 %v847, 0.0
        %v912 = vmax.f32 %v848, 0.0
        %v913 = vmax.f32 %v849, 0.0
        %v914 = vmax.f32 %v850, 0.0
        %v915 = vmax.f32 %v851, 0.0
        %v916 = vmax.f32 %v852, 0.0
        %v917 = vmax.f32 %v853, 0.0
        %v918 = vmax.f32 %v854, 0.0
        %v919 = vmax.f32 %v855, 0.0
        %v920 = vmax.f32 %v856, 0.0
        %v921 = vmax.f32 %v857, 0.0
        %v922 = vmax.f32 %v858, 0.0
        %v923 = vmax.f32 %v859, 0.0
        %v924 = vmax.f32 %v860, 0.0
        %v925 = vmax.f32 %v861, 0.0
        %v926 = vmax.f32 %v862, 0.0
        %v927 = vmax.f32 %v863, 0.0
        %v928 = vmax.f32 %v864, 0.0
        %v929 = vmax.f32 %v865, 0.0
        %v930 = vmax.f32 %v866, 0.0
        %v935 = vcombine.high %v87, %v87
        %v937 = vunpack.c.l.s4 1966171168
        %v938 = vunpack.c.0.s8 %v937
        %v939 = vlaneseq
        %v940 = vshrl.u32 %v939, 7
        %v941 = vsub.s32 %v938, %v940
        %v942 = vrot.slane %v87, %v941
        %v944 = vunpack.c.l.s4 1966171168
        %v945 = vunpack.c.0.s8 %v944
        %v946 = vlaneseq
        %v947 = vshrl.u32 %v946, 7
        %v948 = vsub.s32 %v945, %v947
        %v949 = vrot.slane %v935, %v948
        %v950 = vcombine.high %v942, %v942
        %v951 = vcombine.high %v949, %v949
        %v953 = vunpack.c.l.s4 1966171168
        %v954 = vunpack.c.0.s8 %v953
        %v955 = vlaneseq
        %v956 = vshrl.u32 %v955, 7
        %v957 = vsub.s32 %v954, %v956
        %v958 = vrot.slane %v942, %v957
        %v960 = vunpack.c.l.s4 1966171168
        %v961 = vunpack.c.0.s8 %v960
        %v962 = vlaneseq
        %v963 = vshrl.u32 %v962, 7
        %v964 = vsub.s32 %v961, %v963
        %v965 = vrot.slane %v949, %v964
        %v967 = vunpack.c.l.s4 1966171168
        %v968 = vunpack.c.0.s8 %v967
        %v969 = vlaneseq
        %v970 = vshrl.u32 %v969, 7
        %v971 = vsub.s32 %v968, %v970
        %v972 = vrot.slane %v950, %v971
        %v974 = vunpack.c.l.s4 1966171168
        %v975 = vunpack.c.0.s8 %v974
        %v976 = vlaneseq
        %v977 = vshrl.u32 %v976, 7
        %v978 = vsub.s32 %v975, %v977
        %v979 = vrot.slane %v951, %v978
        %v980 = vcombine.high %v958, %v958
        %v981 = vcombine.high %v965, %v965
        %v982 = vcombine.high %v972, %v972
        %v983 = vcombine.high %v979, %v979
        %v984 = vcombine.high %v88, %v88
        %v986 = vunpack.c.l.s4 1966171168
        %v987 = vunpack.c.0.s8 %v986
        %v988 = vlaneseq
        %v989 = vshrl.u32 %v988, 7
        %v990 = vsub.s32 %v987, %v989
        %v991 = vrot.slane %v88, %v990
        %v993 = vunpack.c.l.s4 1966171168
        %v994 = vunpack.c.0.s8 %v993
        %v995 = vlaneseq
        %v996 = vshrl.u32 %v995, 7
        %v997 = vsub.s32 %v994, %v996
        %v998 = vrot.slane %v984, %v997
        %v999 = vcombine.high %v991, %v991
        %v1000 = vcombine.high %v998, %v998
        %v1002 = vunpack.c.l.s4 1966171168
        %v1003 = vunpack.c.0.s8 %v1002
        %v1004 = vlaneseq
        %v1005 = vshrl.u32 %v1004, 7
        %v1006 = vsub.s32 %v1003, %v1005
        %v1007 = vrot.slane %v991, %v1006
        %v1009 = vunpack.c.l.s4 1966171168
        %v1010 = vunpack.c.0.s8 %v1009
        %v1011 = vlaneseq
        %v1012 = vshrl.u32 %v1011, 7
        %v1013 = vsub.s32 %v1010, %v1012
        %v1014 = vrot.slane %v998, %v1013
        %v1016 = vunpack.c.l.s4 1966171168
        %v1017 = vunpack.c.0.s8 %v1016
        %v1018 = vlaneseq
        %v1019 = vshrl.u32 %v1018, 7
        %v1020 = vsub.s32 %v1017, %v1019
        %v1021 = vrot.slane %v999, %v1020
        %v1023 = vunpack.c.l.s4 1966171168
        %v1024 = vunpack.c.0.s8 %v1023
        %v1025 = vlaneseq
        %v1026 = vshrl.u32 %v1025, 7
        %v1027 = vsub.s32 %v1024, %v1026
        %v1028 = vrot.slane %v1000, %v1027
        %v1029 = vcombine.high %v1007, %v1007
        %v1030 = vcombine.high %v1014, %v1014
        %v1031 = vcombine.high %v1021, %v1021
        %v1032 = vcombine.high %v1028, %v1028
        %v1033 = vcombine.high %v89, %v89
        %v1035 = vunpack.c.l.s4 1966171168
        %v1036 = vunpack.c.0.s8 %v1035
        %v1037 = vlaneseq
        %v1038 = vshrl.u32 %v1037, 7
        %v1039 = vsub.s32 %v1036, %v1038
        %v1040 = vrot.slane %v89, %v1039
        %v1042 = vunpack.c.l.s4 1966171168
        %v1043 = vunpack.c.0.s8 %v1042
        %v1044 = vlaneseq
        %v1045 = vshrl.u32 %v1044, 7
        %v1046 = vsub.s32 %v1043, %v1045
        %v1047 = vrot.slane %v1033, %v1046
        %v1048 = vcombine.high %v1040, %v1040
        %v1049 = vcombine.high %v1047, %v1047
        %v1051 = vunpack.c.l.s4 1966171168
        %v1052 = vunpack.c.0.s8 %v1051
        %v1053 = vlaneseq
        %v1054 = vshrl.u32 %v1053, 7
        %v1055 = vsub.s32 %v1052, %v1054
        %v1056 = vrot.slane %v1040, %v1055
        %v1058 = vunpack.c.l.s4 1966171168
        %v1059 = vunpack.c.0.s8 %v1058
        %v1060 = vlaneseq
        %v1061 = vshrl.u32 %v1060, 7
        %v1062 = vsub.s32 %v1059, %v1061
        %v1063 = vrot.slane %v1047, %v1062
        %v1065 = vunpack.c.l.s4 1966171168
        %v1066 = vunpack.c.0.s8 %v1065
        %v1067 = vlaneseq
        %v1068 = vshrl.u32 %v1067, 7
        %v1069 = vsub.s32 %v1066, %v1068
        %v1070 = vrot.slane %v1048, %v1069
        %v1072 = vunpack.c.l.s4 1966171168
        %v1073 = vunpack.c.0.s8 %v1072
        %v1074 = vlaneseq
        %v1075 = vshrl.u32 %v1074, 7
        %v1076 = vsub.s32 %v1073, %v1075
        %v1077 = vrot.slane %v1049, %v1076
        %v1078 = vcombine.high %v1056, %v1056
        %v1079 = vcombine.high %v1063, %v1063
        %v1080 = vcombine.high %v1070, %v1070
        %v1081 = vcombine.high %v1077, %v1077
        %v1082 = vcombine.high %v90, %v90
        %v1084 = vunpack.c.l.s4 1966171168
        %v1085 = vunpack.c.0.s8 %v1084
        %v1086 = vlaneseq
        %v1087 = vshrl.u32 %v1086, 7
        %v1088 = vsub.s32 %v1085, %v1087
        %v1089 = vrot.slane %v90, %v1088
        %v1091 = vunpack.c.l.s4 1966171168
        %v1092 = vunpack.c.0.s8 %v1091
        %v1093 = vlaneseq
        %v1094 = vshrl.u32 %v1093, 7
        %v1095 = vsub.s32 %v1092, %v1094
        %v1096 = vrot.slane %v1082, %v1095
        %v1097 = vcombine.high %v1089, %v1089
        %v1098 = vcombine.high %v1096, %v1096
        %v1100 = vunpack.c.l.s4 1966171168
        %v1101 = vunpack.c.0.s8 %v1100
        %v1102 = vlaneseq
        %v1103 = vshrl.u32 %v1102, 7
        %v1104 = vsub.s32 %v1101, %v1103
        %v1105 = vrot.slane %v1089, %v1104
        %v1107 = vunpack.c.l.s4 1966171168
        %v1108 = vunpack.c.0.s8 %v1107
        %v1109 = vlaneseq
        %v1110 = vshrl.u32 %v1109, 7
        %v1111 = vsub.s32 %v1108, %v1110
        %v1112 = vrot.slane %v1096, %v1111
        %v1114 = vunpack.c.l.s4 1966171168
        %v1115 = vunpack.c.0.s8 %v1114
        %v1116 = vlaneseq
        %v1117 = vshrl.u32 %v1116, 7
        %v1118 = vsub.s32 %v1115, %v1117
        %v1119 = vrot.slane %v1097, %v1118
        %v1121 = vunpack.c.l.s4 1966171168
        %v1122 = vunpack.c.0.s8 %v1121
        %v1123 = vlaneseq
        %v1124 = vshrl.u32 %v1123, 7
        %v1125 = vsub.s32 %v1122, %v1124
        %v1126 = vrot.slane %v1098, %v1125
        %v1127 = vcombine.high %v1105, %v1105
        %v1128 = vcombine.high %v1112, %v1112
        %v1129 = vcombine.high %v1119, %v1119
        %v1130 = vcombine.high %v1126, %v1126
        %v1131 = vlaneseq
        %v1132 = vshrl.u32 %v1131, 7
        %v1133 = vsub.s32 0, %v1132
        %v1134 = vrot.slane %v958, %v1133
        %v1135 = vlaneseq
        %v1136 = vshrl.u32 %v1135, 7
        %v1137 = vsub.s32 0, %v1136
        %v1138 = vrot.slane %v972, %v1137
        %v1139 = vlaneseq
        %v1140 = vshrl.u32 %v1139, 7
        %v1141 = vsub.s32 0, %v1140
        %v1142 = vrot.slane %v980, %v1141
        %v1143 = vlaneseq
        %v1144 = vshrl.u32 %v1143, 7
        %v1145 = vsub.s32 0, %v1144
        %v1146 = vrot.slane %v982, %v1145
        %v1147 = vlaneseq
        %v1148 = vshrl.u32 %v1147, 7
        %v1149 = vsub.s32 0, %v1148
        %v1150 = vrot.slane %v965, %v1149
        %v1151 = vlaneseq
        %v1152 = vshrl.u32 %v1151, 7
        %v1153 = vsub.s32 0, %v1152
        %v1154 = vrot.slane %v979, %v1153
        %v1155 = vlaneseq
        %v1156 = vshrl.u32 %v1155, 7
        %v1157 = vsub.s32 0, %v1156
        %v1158 = vrot.slane %v981, %v1157
        %v1159 = vlaneseq
        %v1160 = vshrl.u32 %v1159, 7
        %v1161 = vsub.s32 0, %v1160
        %v1162 = vrot.slane %v983, %v1161
        %v1163 = vlaneseq
        %v1164 = vshrl.u32 %v1163, 7
        %v1165 = vsub.s32 0, %v1164
        %v1166 = vrot.slane %v1007, %v1165
        %v1167 = vlaneseq
        %v1168 = vshrl.u32 %v1167, 7
        %v1169 = vsub.s32 0, %v1168
        %v1170 = vrot.slane %v1021, %v1169
        %v1171 = vlaneseq
        %v1172 = vshrl.u32 %v1171, 7
        %v1173 = vsub.s32 0, %v1172
        %v1174 = vrot.slane %v1029, %v1173
        %v1175 = vlaneseq
        %v1176 = vshrl.u32 %v1175, 7
        %v1177 = vsub.s32 0, %v1176
        %v1178 = vrot.slane %v1031, %v1177
        %v1179 = vlaneseq
        %v1180 = vshrl.u32 %v1179, 7
        %v1181 = vsub.s32 0, %v1180
        %v1182 = vrot.slane %v1014, %v1181
        %v1183 = vlaneseq
        %v1184 = vshrl.u32 %v1183, 7
        %v1185 = vsub.s32 0, %v1184
        %v1186 = vrot.slane %v1028, %v1185
        %v1187 = vlaneseq
        %v1188 = vshrl.u32 %v1187, 7
        %v1189 = vsub.s32 0, %v1188
        %v1190 = vrot.slane %v1030, %v1189
        %v1191 = vlaneseq
        %v1192 = vshrl.u32 %v1191, 7
        %v1193 = vsub.s32 0, %v1192
        %v1194 = vrot.slane %v1032, %v1193
        %v1195 = vlaneseq
        %v1196 = vshrl.u32 %v1195, 7
        %v1197 = vsub.s32 0, %v1196
        %v1198 = vrot.slane %v1056, %v1197
        %v1199 = vlaneseq
        %v1200 = vshrl.u32 %v1199, 7
        %v1201 = vsub.s32 0, %v1200
        %v1202 = vrot.slane %v1070, %v1201
        %v1203 = vlaneseq
        %v1204 = vshrl.u32 %v1203, 7
        %v1205 = vsub.s32 0, %v1204
        %v1206 = vrot.slane %v1078, %v1205
        %v1207 = vlaneseq
        %v1208 = vshrl.u32 %v1207, 7
        %v1209 = vsub.s32 0, %v1208
        %v1210 = vrot.slane %v1080, %v1209
        %v1211 = vlaneseq
        %v1212 = vshrl.u32 %v1211, 7
        %v1213 = vsub.s32 0, %v1212
        %v1214 = vrot.slane %v1063, %v1213
        %v1215 = vlaneseq
        %v1216 = vshrl.u32 %v1215, 7
        %v1217 = vsub.s32 0, %v1216
        %v1218 = vrot.slane %v1077, %v1217
        %v1219 = vlaneseq
        %v1220 = vshrl.u32 %v1219, 7
        %v1221 = vsub.s32 0, %v1220
        %v1222 = vrot.slane %v1079, %v1221
        %v1223 = vlaneseq
        %v1224 = vshrl.u32 %v1223, 7
        %v1225 = vsub.s32 0, %v1224
        %v1226 = vrot.slane %v1081, %v1225
        %v1227 = vlaneseq
        %v1228 = vshrl.u32 %v1227, 7
        %v1229 = vsub.s32 0, %v1228
        %v1230 = vrot.slane %v1105, %v1229
        %v1231 = vlaneseq
        %v1232 = vshrl.u32 %v1231, 7
        %v1233 = vsub.s32 0, %v1232
        %v1234 = vrot.slane %v1119, %v1233
        %v1235 = vlaneseq
        %v1236 = vshrl.u32 %v1235, 7
        %v1237 = vsub.s32 0, %v1236
        %v1238 = vrot.slane %v1127, %v1237
        %v1239 = vlaneseq
        %v1240 = vshrl.u32 %v1239, 7
        %v1241 = vsub.s32 0, %v1240
        %v1242 = vrot.slane %v1129, %v1241
        %v1243 = vlaneseq
        %v1244 = vshrl.u32 %v1243, 7
        %v1245 = vsub.s32 0, %v1244
        %v1246 = vrot.slane %v1112, %v1245
        %v1247 = vlaneseq
        %v1248 = vshrl.u32 %v1247, 7
        %v1249 = vsub.s32 0, %v1248
        %v1250 = vrot.slane %v1126, %v1249
        %v1251 = vlaneseq
        %v1252 = vshrl.u32 %v1251, 7
        %v1253 = vsub.s32 0, %v1252
        %v1254 = vrot.slane %v1128, %v1253
        %v1255 = vlaneseq
        %v1256 = vshrl.u32 %v1255, 7
        %v1257 = vsub.s32 0, %v1256
        %v1258 = vrot.slane %v1130, %v1257
        %1259 = vset.pattern.permute.xlu0 0
        %1260 = vperm.xlu0 %1259, %v1134
        %v1261 = vpop.permute.xlu0 %1260
        %1263 = vset.pattern.permute.xlu0 0
        %1264 = vperm.xlu0 %1263, %v1138
        %v1265 = vpop.permute.xlu0 %1264
        %1267 = vset.pattern.permute.xlu0 0
        %1268 = vperm.xlu0 %1267, %v1142
        %v1269 = vpop.permute.xlu0 %1268
        %1271 = vset.pattern.permute.xlu0 0
        %1272 = vperm.xlu0 %1271, %v1146
        %v1273 = vpop.permute.xlu0 %1272
        %1275 = vset.pattern.permute.xlu0 0
        %1276 = vperm.xlu0 %1275, %v1150
        %v1277 = vpop.permute.xlu0 %1276
        %1279 = vset.pattern.permute.xlu0 0
        %1280 = vperm.xlu0 %1279, %v1154
        %v1281 = vpop.permute.xlu0 %1280
        %1283 = vset.pattern.permute.xlu0 0
        %1284 = vperm.xlu0 %1283, %v1158
        %v1285 = vpop.permute.xlu0 %1284
        %1287 = vset.pattern.permute.xlu0 0
        %1288 = vperm.xlu0 %1287, %v1162
        %v1289 = vpop.permute.xlu0 %1288
        %1291 = vset.pattern.permute.xlu0 0
        %1292 = vperm.xlu0 %1291, %v1166
        %v1293 = vpop.permute.xlu0 %1292
        %1295 = vset.pattern.permute.xlu0 0
        %1296 = vperm.xlu0 %1295, %v1170
        %v1297 = vpop.permute.xlu0 %1296
        %1299 = vset.pattern.permute.xlu0 0
        %1300 = vperm.xlu0 %1299, %v1174
        %v1301 = vpop.permute.xlu0 %1300
        %1303 = vset.pattern.permute.xlu0 0
        %1304 = vperm.xlu0 %1303, %v1178
        %v1305 = vpop.permute.xlu0 %1304
        %1307 = vset.pattern.permute.xlu0 0
        %1308 = vperm.xlu0 %1307, %v1182
        %v1309 = vpop.permute.xlu0 %1308
        %1311 = vset.pattern.permute.xlu0 0
        %1312 = vperm.xlu0 %1311, %v1186
        %v1313 = vpop.permute.xlu0 %1312
        %1315 = vset.pattern.permute.xlu0 0
        %1316 = vperm.xlu0 %1315, %v1190
        %v1317 = vpop.permute.xlu0 %1316
        %1319 = vset.pattern.permute.xlu0 0
        %1320 = vperm.xlu0 %1319, %v1194
        %v1321 = vpop.permute.xlu0 %1320
        %1323 = vset.pattern.permute.xlu0 0
        %1324 = vperm.xlu0 %1323, %v1198
        %v1325 = vpop.permute.xlu0 %1324
        %1327 = vset.pattern.permute.xlu0 0
        %1328 = vperm.xlu0 %1327, %v1202
        %v1329 = vpop.permute.xlu0 %1328
        %1331 = vset.pattern.permute.xlu0 0
        %1332 = vperm.xlu0 %1331, %v1206
        %v1333 = vpop.permute.xlu0 %1332
        %1335 = vset.pattern.permute.xlu0 0
        %1336 = vperm.xlu0 %1335, %v1210
        %v1337 = vpop.permute.xlu0 %1336
        %1339 = vset.pattern.permute.xlu0 0
        %1340 = vperm.xlu0 %1339, %v1214
        %v1341 = vpop.permute.xlu0 %1340
        %1343 = vset.pattern.permute.xlu0 0
        %1344 = vperm.xlu0 %1343, %v1218
        %v1345 = vpop.permute.xlu0 %1344
        %1347 = vset.pattern.permute.xlu0 0
        %1348 = vperm.xlu0 %1347, %v1222
        %v1349 = vpop.permute.xlu0 %1348
        %1351 = vset.pattern.permute.xlu0 0
        %1352 = vperm.xlu0 %1351, %v1226
        %v1353 = vpop.permute.xlu0 %1352
        %1355 = vset.pattern.permute.xlu0 0
        %1356 = vperm.xlu0 %1355, %v1230
        %v1357 = vpop.permute.xlu0 %1356
        %1359 = vset.pattern.permute.xlu0 0
        %1360 = vperm.xlu0 %1359, %v1234
        %v1361 = vpop.permute.xlu0 %1360
        %1363 = vset.pattern.permute.xlu0 0
        %1364 = vperm.xlu0 %1363, %v1238
        %v1365 = vpop.permute.xlu0 %1364
        %1367 = vset.pattern.permute.xlu0 0
        %1368 = vperm.xlu0 %1367, %v1242
        %v1369 = vpop.permute.xlu0 %1368
        %1371 = vset.pattern.permute.xlu0 0
        %1372 = vperm.xlu0 %1371, %v1246
        %v1373 = vpop.permute.xlu0 %1372
        %1375 = vset.pattern.permute.xlu0 0
        %1376 = vperm.xlu0 %1375, %v1250
        %v1377 = vpop.permute.xlu0 %1376
        %1379 = vset.pattern.permute.xlu0 0
        %1380 = vperm.xlu0 %1379, %v1254
        %v1381 = vpop.permute.xlu0 %1380
        %1383 = vset.pattern.permute.xlu0 0
        %1384 = vperm.xlu0 %1383, %v1258
        %v1385 = vpop.permute.xlu0 %1384
        %v1387 = vmul.f32 %v867, %v1261
        %v1388 = vmul.f32 %v868, %v1261
        %v1389 = vmul.f32 %v869, %v1265
        %v1390 = vmul.f32 %v870, %v1265
        %v1391 = vmul.f32 %v871, %v1269
        %v1392 = vmul.f32 %v872, %v1269
        %v1393 = vmul.f32 %v873, %v1273
        %v1394 = vmul.f32 %v874, %v1273
        %v1395 = vmul.f32 %v875, %v1277
        %v1396 = vmul.f32 %v876, %v1277
        %v1397 = vmul.f32 %v877, %v1281
        %v1398 = vmul.f32 %v878, %v1281
        %v1399 = vmul.f32 %v879, %v1285
        %v1400 = vmul.f32 %v880, %v1285
        %v1401 = vmul.f32 %v881, %v1289
        %v1402 = vmul.f32 %v882, %v1289
        %v1403 = vmul.f32 %v883, %v1293
        %v1404 = vmul.f32 %v884, %v1293
        %v1405 = vmul.f32 %v885, %v1297
        %v1406 = vmul.f32 %v886, %v1297
        %v1407 = vmul.f32 %v887, %v1301
        %v1408 = vmul.f32 %v888, %v1301
        %v1409 = vmul.f32 %v889, %v1305
        %v1410 = vmul.f32 %v890, %v1305
        %v1411 = vmul.f32 %v891, %v1309
        %v1412 = vmul.f32 %v892, %v1309
        %v1413 = vmul.f32 %v893, %v1313
        %v1414 = vmul.f32 %v894, %v1313
        %v1415 = vmul.f32 %v895, %v1317
        %v1416 = vmul.f32 %v896, %v1317
        %v1417 = vmul.f32 %v897, %v1321
        %v1418 = vmul.f32 %v898, %v1321
        %v1419 = vmul.f32 %v899, %v1325
        %v1420 = vmul.f32 %v900, %v1325
        %v1421 = vmul.f32 %v901, %v1329
        %v1422 = vmul.f32 %v902, %v1329
        %v1423 = vmul.f32 %v903, %v1333
        %v1424 = vmul.f32 %v904, %v1333
        %v1425 = vmul.f32 %v905, %v1337
        %v1426 = vmul.f32 %v906, %v1337
        %v1427 = vmul.f32 %v907, %v1341
        %v1428 = vmul.f32 %v908, %v1341
        %v1429 = vmul.f32 %v909, %v1345
        %v1430 = vmul.f32 %v910, %v1345
        %v1431 = vmul.f32 %v911, %v1349
        %v1432 = vmul.f32 %v912, %v1349
        %v1433 = vmul.f32 %v913, %v1353
        %v1434 = vmul.f32 %v914, %v1353
        %v1435 = vmul.f32 %v915, %v1357
        %v1436 = vmul.f32 %v916, %v1357
        %v1437 = vmul.f32 %v917, %v1361
        %v1438 = vmul.f32 %v918, %v1361
        %v1439 = vmul.f32 %v919, %v1365
        %v1440 = vmul.f32 %v920, %v1365
        %v1441 = vmul.f32 %v921, %v1369
        %v1442 = vmul.f32 %v922, %v1369
        %v1443 = vmul.f32 %v923, %v1373
        %v1444 = vmul.f32 %v924, %v1373
        %v1445 = vmul.f32 %v925, %v1377
        %v1446 = vmul.f32 %v926, %v1377
        %v1447 = vmul.f32 %v927, %v1381
        %v1448 = vmul.f32 %v928, %v1381
        %v1449 = vmul.f32 %v929, %v1385
        %v1450 = vmul.f32 %v930, %v1385
        %vm1451 = vcmask 130048
        %v1452 = vsel %vm1451, %v1387, 0.0
        %v1453 = vsel %vm1451, %v1389, 0.0
        %v1454 = vadd.f32 %v1452, %v1453
        %v1455 = vsel %vm1451, %v1391, 0.0
        %v1456 = vadd.f32 %v1454, %v1455
        %v1457 = vsel %vm1451, %v1393, 0.0
        %v1458 = vadd.f32 %v1456, %v1457
        %v1459 = vsel %vm1451, %v1395, 0.0
        %v1460 = vadd.f32 %v1458, %v1459
        %v1461 = vsel %vm1451, %v1397, 0.0
        %v1462 = vadd.f32 %v1460, %v1461
        %v1463 = vsel %vm1451, %v1399, 0.0
        %v1464 = vadd.f32 %v1462, %v1463
        %v1465 = vsel %vm1451, %v1401, 0.0
        %v1466 = vadd.f32 %v1464, %v1465
        %v1467 = vsel %vm1451, %v1403, 0.0
        %v1468 = vadd.f32 %v1466, %v1467
        %v1469 = vsel %vm1451, %v1405, 0.0
        %v1470 = vadd.f32 %v1468, %v1469
        %v1471 = vsel %vm1451, %v1407, 0.0
        %v1472 = vadd.f32 %v1470, %v1471
        %v1473 = vsel %vm1451, %v1409, 0.0
        %v1474 = vadd.f32 %v1472, %v1473
        %v1475 = vsel %vm1451, %v1411, 0.0
        %v1476 = vadd.f32 %v1474, %v1475
        %v1477 = vsel %vm1451, %v1413, 0.0
        %v1478 = vadd.f32 %v1476, %v1477
        %v1479 = vsel %vm1451, %v1415, 0.0
        %v1480 = vadd.f32 %v1478, %v1479
        %v1481 = vsel %vm1451, %v1417, 0.0
        %v1482 = vadd.f32 %v1480, %v1481
        %v1483 = vsel %vm1451, %v1419, 0.0
        %v1484 = vadd.f32 %v1482, %v1483
        %v1485 = vsel %vm1451, %v1421, 0.0
        %v1486 = vadd.f32 %v1484, %v1485
        %v1487 = vsel %vm1451, %v1423, 0.0
        %v1488 = vadd.f32 %v1486, %v1487
        %v1489 = vsel %vm1451, %v1425, 0.0
        %v1490 = vadd.f32 %v1488, %v1489
        %v1491 = vsel %vm1451, %v1427, 0.0
        %v1492 = vadd.f32 %v1490, %v1491
        %v1493 = vsel %vm1451, %v1429, 0.0
        %v1494 = vadd.f32 %v1492, %v1493
        %v1495 = vsel %vm1451, %v1431, 0.0
        %v1496 = vadd.f32 %v1494, %v1495
        %v1497 = vsel %vm1451, %v1433, 0.0
        %v1498 = vadd.f32 %v1496, %v1497
        %v1499 = vsel %vm1451, %v1435, 0.0
        %v1500 = vadd.f32 %v1498, %v1499
        %v1501 = vsel %vm1451, %v1437, 0.0
        %v1502 = vadd.f32 %v1500, %v1501
        %v1503 = vsel %vm1451, %v1439, 0.0
        %v1504 = vadd.f32 %v1502, %v1503
        %v1505 = vsel %vm1451, %v1441, 0.0
        %v1506 = vadd.f32 %v1504, %v1505
        %v1507 = vsel %vm1451, %v1443, 0.0
        %v1508 = vadd.f32 %v1506, %v1507
        %v1509 = vsel %vm1451, %v1445, 0.0
        %v1510 = vadd.f32 %v1508, %v1509
        %v1511 = vsel %vm1451, %v1447, 0.0
        %v1512 = vadd.f32 %v1510, %v1511
        %v1513 = vsel %vm1451, %v1449, 0.0
        %v1514 = vadd.f32 %v1512, %v1513
        %v1515 = vsel %vm1451, %v1388, 0.0
        %v1516 = vsel %vm1451, %v1390, 0.0
        %v1517 = vadd.f32 %v1515, %v1516
        %v1518 = vsel %vm1451, %v1392, 0.0
        %v1519 = vadd.f32 %v1517, %v1518
        %v1520 = vsel %vm1451, %v1394, 0.0
        %v1521 = vadd.f32 %v1519, %v1520
        %v1522 = vsel %vm1451, %v1396, 0.0
        %v1523 = vadd.f32 %v1521, %v1522
        %v1524 = vsel %vm1451, %v1398, 0.0
        %v1525 = vadd.f32 %v1523, %v1524
        %v1526 = vsel %vm1451, %v1400, 0.0
        %v1527 = vadd.f32 %v1525, %v1526
        %v1528 = vsel %vm1451, %v1402, 0.0
        %v1529 = vadd.f32 %v1527, %v1528
        %v1530 = vsel %vm1451, %v1404, 0.0
        %v1531 = vadd.f32 %v1529, %v1530
        %v1532 = vsel %vm1451, %v1406, 0.0
        %v1533 = vadd.f32 %v1531, %v1532
        %v1534 = vsel %vm1451, %v1408, 0.0
        %v1535 = vadd.f32 %v1533, %v1534
        %v1536 = vsel %vm1451, %v1410, 0.0
        %v1537 = vadd.f32 %v1535, %v1536
        %v1538 = vsel %vm1451, %v1412, 0.0
        %v1539 = vadd.f32 %v1537, %v1538
        %v1540 = vsel %vm1451, %v1414, 0.0
        %v1541 = vadd.f32 %v1539, %v1540
        %v1542 = vsel %vm1451, %v1416, 0.0
        %v1543 = vadd.f32 %v1541, %v1542
        %v1544 = vsel %vm1451, %v1418, 0.0
        %v1545 = vadd.f32 %v1543, %v1544
        %v1546 = vsel %vm1451, %v1420, 0.0
        %v1547 = vadd.f32 %v1545, %v1546
        %v1548 = vsel %vm1451, %v1422, 0.0
        %v1549 = vadd.f32 %v1547, %v1548
        %v1550 = vsel %vm1451, %v1424, 0.0
        %v1551 = vadd.f32 %v1549, %v1550
        %v1552 = vsel %vm1451, %v1426, 0.0
        %v1553 = vadd.f32 %v1551, %v1552
        %v1554 = vsel %vm1451, %v1428, 0.0
        %v1555 = vadd.f32 %v1553, %v1554
        %v1556 = vsel %vm1451, %v1430, 0.0
        %v1557 = vadd.f32 %v1555, %v1556
        %v1558 = vsel %vm1451, %v1432, 0.0
        %v1559 = vadd.f32 %v1557, %v1558
        %v1560 = vsel %vm1451, %v1434, 0.0
        %v1561 = vadd.f32 %v1559, %v1560
        %v1562 = vsel %vm1451, %v1436, 0.0
        %v1563 = vadd.f32 %v1561, %v1562
        %v1564 = vsel %vm1451, %v1438, 0.0
        %v1565 = vadd.f32 %v1563, %v1564
        %v1566 = vsel %vm1451, %v1440, 0.0
        %v1567 = vadd.f32 %v1565, %v1566
        %v1568 = vsel %vm1451, %v1442, 0.0
        %v1569 = vadd.f32 %v1567, %v1568
        %v1570 = vsel %vm1451, %v1444, 0.0
        %v1571 = vadd.f32 %v1569, %v1570
        %v1572 = vsel %vm1451, %v1446, 0.0
        %v1573 = vadd.f32 %v1571, %v1572
        %v1574 = vsel %vm1451, %v1448, 0.0
        %v1575 = vadd.f32 %v1573, %v1574
        %v1576 = vsel %vm1451, %v1450, 0.0
        %v1577 = vadd.f32 %v1575, %v1576
        %s1578 = smul.u32 %s70, 16
        %s1579 = scalar_lea.vmem %s5, %s1578
        %v1580 = vld [vmem:[%s1579] sm:$0xff]
        %v1581 = vld [vmem:[%s1579 + $0x8] sm:$0xff]
        %1583 = vset.pattern.permute.xlu0 0
        %1584 = vperm.xlu0 %1583, %v1580
        %v1585 = vpop.permute.xlu0 %1584
        %1588 = vset.pattern.permute.xlu0 0
        %1589 = vperm.xlu0 %1588, %v1581
        %v1590 = vpop.permute.xlu0 %1589
        %v1592 = vadd.f32 %v1514, %v1585
        %v1593 = vadd.f32 %v1577, %v1590
        %s1594 = scalar_lea.vmem %s6, %s70
        %v1595 = vld [vmem:[%s1594] sm:$0x1]
        %v1597 = vlaneseq
        %v1598 = vshrl.u32 %v1597, 7
        %v1599 = vsub.s32 0, %v1598
        %v1600 = vrot.slane %v1595, %v1599
        %v1602 = vadd.f32 %v1592, %v1600
        %v1603 = vadd.f32 %v1593, %v1600
        %v1604 = vadd.f32 %v1602, %v67
        %v1605 = vadd.f32 %v1603, %v68
        %s1606 = scalar_lea.vmem [#allocation2], %s1578
        %v1607 = vld [vmem:[%s1606] sm:$0xff]
        %v1608 = vld [vmem:[%s1606 + $0x8] sm:$0xff]
        %v1609 = vsel %vm1451, %v1604, -inf
        %1610 = vmax.xlane.f32.xlu0 %v1609
        %v1611 = vpop.xlane.xlu0 %1610
        %v1612 = vsel %vm1451, %v1605, -inf
        %1613 = vmax.xlane.f32.xlu0 %v1612
        %v1614 = vpop.xlane.xlu0 %1613
        %v1615 = vmax.f32 %v1607, %v1611
        %v1616 = vmax.f32 %v1608, %v1614
        %v1617 = vsub.f32 %v1607, %v1615
        %v1618 = vsub.f32 %v1608, %v1616
        %v1619 = vmul.f32 %v1617, 1.442695
        %v1620 = vpow.pop %v1619
        %v1621 = vmul.f32 %v1618, 1.442695
        %v1622 = vpow.pop %v1621
        %1624 = vset.pattern.permute.xlu0 0
        %1625 = vperm.xlu0 %1624, %v1615
        %v1626 = vpop.permute.xlu0 %1625
        %1629 = vset.pattern.permute.xlu0 0
        %1630 = vperm.xlu0 %1629, %v1616
        %v1631 = vpop.permute.xlu0 %1630
        %v1633 = vsub.f32 %v1604, %v1626
        %v1634 = vsub.f32 %v1605, %v1631
        %v1635 = vmul.f32 %v1633, 1.442695
        %v1636 = vpow.pop %v1635
        %v1637 = vmul.f32 %v1634, 1.442695
        %v1638 = vpow.pop %v1637
        %s1639 = scalar_lea.vmem [#allocation3], %s1578
        %v1640 = vld [vmem:[%s1639] sm:$0xff]
        %v1641 = vld [vmem:[%s1639 + $0x8] sm:$0xff]
        %v1642 = vmul.f32 %v1620, %v1640
        %v1643 = vmul.f32 %v1622, %v1641
        %v1644 = vsel %vm1451, %v1636, 0.0
        %1645 = vadd.xlane.f32.xlu0 %v1644
        %v1646 = vpop.xlane.xlu0 %1645
        %v1647 = vsel %vm1451, %v1638, 0.0
        %1648 = vadd.xlane.f32.xlu0 %v1647
        %v1649 = vpop.xlane.xlu0 %1648
        %v1650 = vadd.f32 %v1642, %v1646
        %v1651 = vadd.f32 %v1643, %v1649
        %vm1652 = vcmask 7168
        %1653 = vst.msk [vmem:[%s1639] sm:$0xff] %vm1652, %v1650
        %1654 = vst.msk [vmem:[%s1639 + $0x8] sm:$0xff] %vm1652, %v1651
        %s1655 = scalar_lea.vmem [#allocation4], %s1578
        %v1656 = vld [vmem:[%s1655] sm:$0xff]
        %v1657 = vld [vmem:[%s1655 + $0x8] sm:$0xff]
        %1659 = vset.pattern.permute.xlu0 0
        %1660 = vperm.xlu0 %1659, %v1620
        %v1661 = vpop.permute.xlu0 %1660
        %1664 = vset.pattern.permute.xlu0 0
        %1665 = vperm.xlu0 %1664, %v1622
        %v1666 = vpop.permute.xlu0 %1665
        %v1668 = vmul.f32 %v1661, %v1656
        %v1669 = vmul.f32 %v1666, %v1657
        %v1670 = vpack.c.bf16 %v1638, %v1636
        %s1671 = smul.u32 %s70, 2
        %s1672 = smul.addr %s1671, 4
        %s1673 = scalar_lea.vmem %s3, %s1672
        %v1674 = vld [vmem:[%s1673] sm:$0xf]
        %v1675 = vld [vmem:[%s1673 + $0x4] sm:$0xf]
        %v1678 = vunpack.c.l.b16 %v1674
        %v1679 = vunpack.c.l.b16 %v1675
        %v1680 = vpack.c.b16 %v1679, %v1678
        %v1683 = vsel %vm1451, %v1670, 0
        %1685 = vmatprep.subr.bf16.mxu0 0
        %1686 = vmatpush1.bf16.msra.mxu0 0
        %1687 = vmatprep.subr.bf16.mxu0 0
        %1688 = vmatpush1.bf16.msra.mxu0 0
        %1689 = vmatprep.subr.bf16.mxu0 0
        %1690 = vmatpush1.bf16.msra.mxu0 0
        %1691 = vmatprep.subr.bf16.mxu0 0
        %1692 = vmatpush1.bf16.msra.mxu0 0
        %1693 = vmatprep.subr.bf16.mxu0 0
        %1694 = vmatpush1.bf16.msra.mxu0 0
        %1695 = vmatprep.subr.bf16.mxu0 0
        %1696 = vmatpush1.bf16.msra.mxu0 0
        %1697 = vmatprep.subr.bf16.mxu0 0
        %1698 = vmatpush1.bf16.msra.mxu0 0
        %1699 = vmatprep.subr.bf16.mxu0 0
        %1700 = vmatpush1.bf16.msra.mxu0 %v1680
        %1701 = vmatprep.subr.bf16.mxu0 0
        %1702 = vmatpush2.bf16.msra.mxu0 0
        %1703 = vmatprep.subr.bf16.mxu0 0
        %1704 = vmatpush2.bf16.msra.mxu0 0
        %1705 = vmatprep.subr.bf16.mxu0 0
        %1706 = vmatpush2.bf16.msra.mxu0 0
        %1707 = vmatprep.subr.bf16.mxu0 0
        %1708 = vmatpush2.bf16.msra.mxu0 0
        %1709 = vmatprep.subr.bf16.mxu0 0
        %1710 = vmatpush2.bf16.msra.mxu0 0
        %1711 = vmatprep.subr.bf16.mxu0 0
        %1712 = vmatpush2.bf16.msra.mxu0 0
        %1713 = vmatprep.subr.bf16.mxu0 0
        %1714 = vmatpush2.bf16.msra.mxu0 0
        %1715 = vmatprep.subr.bf16.mxu0 0
        %1716 = vmatpush2.bf16.msra.mxu0 0
        %1717 = vmatprep.mubr.bf16.mxu0 0
        %1718 = vmatmul.mubr.bf16.gmra.mxu0 %v1683
        %v1719 = vpop.f32.mrf.mxu0
        %v1720 = vadd.f32 0.0, %v1719
        %v1721 = vpop.f32.mrf.mxu0
        %v1722 = vpop.f32.mrf.mxu0
        %v1723 = vadd.f32 0.0, %v1722
        %v1724 = vpop.f32.mrf.mxu0
        %1725 = vdwg.mxu0
        %v1726 = vadd.f32 %v1668, %v1720
        %v1727 = vadd.f32 %v1669, %v1723
        %vm1728 = vcmask 261120
        %1729 = vst.msk [vmem:[%s1655] sm:$0xff] %vm1728, %v1726
        %1730 = vst.msk [vmem:[%s1655 + $0x8] sm:$0xff] %vm1728, %v1727
        %1731 = vst.msk [vmem:[%s1606] sm:$0xff] %vm1652, %v1615
        %1732 = vst.msk [vmem:[%s1606 + $0x8] sm:$0xff] %vm1652, %v1616
      $region46: #{tpu_custom_call.1} parent=40 // loop_footer
        %s74 = sadd.s32 1, %s70
      $region47: #{tpu_custom_call.1} parent=40 // loop_footer_branch
        %69 = sbr.rel target = $region43
      $region48: #{tpu_custom_call.1} parent=40 // loop_exit
        _
    $region41: #{tpu_custom_call.1} parent=1 // pred_fallthru
      _
    // Predicated region
    $region49: #{tpu_custom_call.1} parent=1 // pred_check
      %p1733 = pneg %p33
    $region50: #{tpu_custom_call.1} parent=1 // pred_check_branch
      %1735 = sbr.rel (%p1733) target = $region52
    $region51: #{tpu_custom_call.1} parent=1 // pred_region
      %v1736 = vld [vmem:[#allocation2] sm:$0xff]
      %v1737 = vld [vmem:[#allocation2 + $0x8] sm:$0xff]
      %vm1738 = vcmp.gt.f32.partialorder %v1736, -1e+08
      %vm1739 = vcmp.gt.f32.partialorder %v1737, -1e+08
      %v1740 = vld [vmem:[#allocation3] sm:$0xff]
      %v1741 = vld [vmem:[#allocation3 + $0x8] sm:$0xff]
      %v1742 = vrcp.pop %v1740
      %v1743 = vrcp.pop %v1741
      %v1744 = vld [vmem:[#allocation4] sm:$0xff]
      %v1745 = vld [vmem:[#allocation4 + $0x8] sm:$0xff]
      %1747 = vset.pattern.permute.xlu0 0
      %1748 = vperm.xlu0 %1747, %v1742
      %v1749 = vpop.permute.xlu0 %1748
      %1752 = vset.pattern.permute.xlu0 0
      %1753 = vperm.xlu0 %1752, %v1743
      %v1754 = vpop.permute.xlu0 %1753
      %v1756 = vmul.f32 %v1744, %v1749
      %v1757 = vmul.f32 %v1745, %v1754
      %v1758 = vsel %vm1738, 1, 0
      %v1759 = vsel %vm1739, 1, 0
      %1760 = vset.pattern.permute.xlu0 0
      %1761 = vperm.xlu0 %1760, %v1758
      %v1762 = vpop.permute.xlu0 %1761
      %1763 = vset.pattern.permute.xlu0 0
      %1764 = vperm.xlu0 %1763, %v1759
      %v1765 = vpop.permute.xlu0 %1764
      %vm1766 = vcmp.eq.s32.totalorder %v1762, 1
      %vm1767 = vcmp.eq.s32.totalorder %v1765, 1
      %v1768 = vsel %vm1766, %v1756, 0.0
      %v1769 = vsel %vm1767, %v1757, 0.0
      %v1770 = vld [vmem:[%s8] sm:$0x1]
      %v1772 = vlaneseq
      %v1773 = vshrl.u32 %v1772, 7
      %v1774 = vsub.s32 0, %v1773
      %v1775 = vrot.slane %v1770, %v1774
      %v1777 = vadd.f32 %v1768, %v1775
      %v1778 = vadd.f32 %v1769, %v1775
      %v1779 = vmax.f32 %v1777, 0.0
      %v1780 = vmax.f32 %v1778, 0.0
      %vm1781 = vcmask 261120
      %1782 = vst.msk [vmem:[#allocation7] sm:$0xff] %vm1781, %v1779
      %1783 = vst.msk [vmem:[#allocation7 + $0x8] sm:$0xff] %vm1781, %v1780
      %s1784 = scalar_lea.vmem [#allocation2], 16
      %v1785 = vld [vmem:[%s1784] sm:$0xff]
      %v1786 = vld [vmem:[%s1784 + $0x8] sm:$0xff]
      %vm1787 = vcmp.gt.f32.partialorder %v1785, -1e+08
      %vm1788 = vcmp.gt.f32.partialorder %v1786, -1e+08
      %s1789 = scalar_lea.vmem [#allocation3], 16
      %v1790 = vld [vmem:[%s1789] sm:$0xff]
      %v1791 = vld [vmem:[%s1789 + $0x8] sm:$0xff]
      %v1792 = vrcp.pop %v1790
      %v1793 = vrcp.pop %v1791
      %s1794 = scalar_lea.vmem [#allocation4], 16
      %v1795 = vld [vmem:[%s1794] sm:$0xff]
      %v1796 = vld [vmem:[%s1794 + $0x8] sm:$0xff]
      %1798 = vset.pattern.permute.xlu0 0
      %1799 = vperm.xlu0 %1798, %v1792
      %v1800 = vpop.permute.xlu0 %1799
      %1803 = vset.pattern.permute.xlu0 0
      %1804 = vperm.xlu0 %1803, %v1793
      %v1805 = vpop.permute.xlu0 %1804
      %v1807 = vmul.f32 %v1795, %v1800
      %v1808 = vmul.f32 %v1796, %v1805
      %v1809 = vsel %vm1787, 1, 0
      %v1810 = vsel %vm1788, 1, 0
      %1811 = vset.pattern.permute.xlu0 0
      %1812 = vperm.xlu0 %1811, %v1809
      %v1813 = vpop.permute.xlu0 %1812
      %1814 = vset.pattern.permute.xlu0 0
      %1815 = vperm.xlu0 %1814, %v1810
      %v1816 = vpop.permute.xlu0 %1815
      %vm1817 = vcmp.eq.s32.totalorder %v1813, 1
      %vm1818 = vcmp.eq.s32.totalorder %v1816, 1
      %v1819 = vsel %vm1817, %v1807, 0.0
      %v1820 = vsel %vm1818, %v1808, 0.0
      %s1821 = scalar_lea.vmem %s8, 1
      %v1822 = vld [vmem:[%s1821] sm:$0x1]
      %v1824 = vlaneseq
      %v1825 = vshrl.u32 %v1824, 7
      %v1826 = vsub.s32 0, %v1825
      %v1827 = vrot.slane %v1822, %v1826
      %v1829 = vadd.f32 %v1819, %v1827
      %v1830 = vadd.f32 %v1820, %v1827
      %v1831 = vmax.f32 %v1829, 0.0
      %v1832 = vmax.f32 %v1830, 0.0
      %s1833 = scalar_lea.vmem [#allocation7], 16
      %1834 = vst.msk [vmem:[%s1833] sm:$0xff] %vm1781, %v1831
      %1835 = vst.msk [vmem:[%s1833 + $0x8] sm:$0xff] %vm1781, %v1832
      %s1836 = scalar_lea.vmem [#allocation2], 32
      %v1837 = vld [vmem:[%s1836] sm:$0xff]
      %v1838 = vld [vmem:[%s1836 + $0x8] sm:$0xff]
      %vm1839 = vcmp.gt.f32.partialorder %v1837, -1e+08
      %vm1840 = vcmp.gt.f32.partialorder %v1838, -1e+08
      %s1841 = scalar_lea.vmem [#allocation3], 32
      %v1842 = vld [vmem:[%s1841] sm:$0xff]
      %v1843 = vld [vmem:[%s1841 + $0x8] sm:$0xff]
      %v1844 = vrcp.pop %v1842
      %v1845 = vrcp.pop %v1843
      %s1846 = scalar_lea.vmem [#allocation4], 32
      %v1847 = vld [vmem:[%s1846] sm:$0xff]
      %v1848 = vld [vmem:[%s1846 + $0x8] sm:$0xff]
      %1850 = vset.pattern.permute.xlu0 0
      %1851 = vperm.xlu0 %1850, %v1844
      %v1852 = vpop.permute.xlu0 %1851
      %1855 = vset.pattern.permute.xlu0 0
      %1856 = vperm.xlu0 %1855, %v1845
      %v1857 = vpop.permute.xlu0 %1856
      %v1859 = vmul.f32 %v1847, %v1852
      %v1860 = vmul.f32 %v1848, %v1857
      %v1861 = vsel %vm1839, 1, 0
      %v1862 = vsel %vm1840, 1, 0
      %1863 = vset.pattern.permute.xlu0 0
      %1864 = vperm.xlu0 %1863, %v1861
      %v1865 = vpop.permute.xlu0 %1864
      %1866 = vset.pattern.permute.xlu0 0
      %1867 = vperm.xlu0 %1866, %v1862
      %v1868 = vpop.permute.xlu0 %1867
      %vm1869 = vcmp.eq.s32.totalorder %v1865, 1
      %vm1870 = vcmp.eq.s32.totalorder %v1868, 1
      %v1871 = vsel %vm1869, %v1859, 0.0
      %v1872 = vsel %vm1870, %v1860, 0.0
      %s1873 = scalar_lea.vmem %s8, 2
      %v1874 = vld [vmem:[%s1873] sm:$0x1]
      %v1876 = vlaneseq
      %v1877 = vshrl.u32 %v1876, 7
      %v1878 = vsub.s32 0, %v1877
      %v1879 = vrot.slane %v1874, %v1878
      %v1881 = vadd.f32 %v1871, %v1879
      %v1882 = vadd.f32 %v1872, %v1879
      %v1883 = vmax.f32 %v1881, 0.0
      %v1884 = vmax.f32 %v1882, 0.0
      %s1885 = scalar_lea.vmem [#allocation7], 32
      %1886 = vst.msk [vmem:[%s1885] sm:$0xff] %vm1781, %v1883
      %1887 = vst.msk [vmem:[%s1885 + $0x8] sm:$0xff] %vm1781, %v1884
    $region52: #{tpu_custom_call.1} parent=1 // pred_fallthru
      _
    // Predicated region
    $region53: #{tpu_custom_call.1} parent=1 // pred_check
      _
    $region54: #{tpu_custom_call.1} parent=1 // pred_check_branch
      %1889 = sbr.rel (0) target = $region56
    $region55: #{tpu_custom_call.1} parent=1 // pred_region
      %s1891 = ssub.s32 768, 768
      %1892 = vsyncadd [#allocation8], %s1891
      %s1893 = sshll.u32 [#allocation7], 4
      %s1894 = int_to_ptr.vmem [resolvable:$true] %s1893
      %1899 = dma.vmem_to_hbm [thread:$0]  %s1894, 768, %s9, [#allocation8], 128, 128, 8
    $region56: #{tpu_custom_call.1} parent=1 // pred_fallthru
      _
    // Predicated region
    $region57: #{tpu_custom_call.1} parent=1 // pred_check
      _
    $region58: #{tpu_custom_call.1} parent=1 // pred_check_branch
      %1901 = sbr.rel (0) target = $region60
    $region59: #{tpu_custom_call.1} parent=1 // pred_region
      %1902 = dma.done [#allocation8], 768
    $region60: #{tpu_custom_call.1} parent=1 // pred_fallthru
      _
    %1903 = vsyncpa [#allocation8], 1

</llo_original>
